<compile_context>
chip_gen: v7x
topology: tpu7x:2x2x1
jax: 0.10.0
libtpu: 0.0.40
codegen_flags: <defaults>
</compile_context>

<pallas_src>
import math

import jax
import jax.numpy as jnp
from jax.experimental import pallas as pl
from jax.experimental.pallas import tpu as pltpu

# ------------------------- problem sizes (small, synthetic) -------------------------
OBS_DIM = 32                        # stands in for Humanoid obs_dim
ACT_DIM = 8                         # stands in for Humanoid act_dim
HIDDEN = 64
FUSED_HIDDEN = 2 * HIDDEN           # actor + critic hidden fused side-by-side = 128
IN_W = OBS_DIM + ACT_DIM            # packed input slab width = 40
PACK_W = 128                        # lane-dense packed output: mean[0:8], value[8], logp[9]
LOGP_COL = ACT_DIM + 1              # column 9 of the packed output
BATCH = 256
BLOCK_ROWS = 1024                   # batch tile (rows per grid step); B<=1024 -> grid=(1,)
ACTION_STD = 0.5                    # module-level constant in the reference code

_LOG_2PI = math.log(2.0 * math.pi)
_VAR = ACTION_STD ** 2
_LOGP_CONST = -0.5 * ACT_DIM * (_LOG_2PI + math.log(_VAR))
_ENTROPY_CONST = 0.5 * ACT_DIM * (1.0 + _LOG_2PI) + 0.5 * ACT_DIM * math.log(_VAR)


# ------------------------------------ kernel ----------------------------------------
def _ac_fused_kernel(inp_ref, w1_ref, b1_ref, w2_ref, b2_ref, w3_ref, b3_ref, out_ref):
    # inp: (TM, 40) f32 — state in lanes 0:32, action in lanes 32:40.
    inp = inp_ref[...]
    x = inp.astype(w1_ref.dtype)                                 # bf16 (or f32) MXU operand

    # Fused actor+critic MLP: three 128-wide MXU matmuls, f32 accumulation.
    h1 = jnp.tanh(jnp.dot(x, w1_ref[...],
                          preferred_element_type=jnp.float32) + b1_ref[...])   # (TM,128) f32
    h2 = jnp.tanh(jnp.dot(h1.astype(w2_ref.dtype), w2_ref[...],
                          preferred_element_type=jnp.float32) + b2_ref[...])   # (TM,128) f32
    out3 = jnp.dot(h2.astype(w3_ref.dtype), w3_ref[...],
                   preferred_element_type=jnp.float32) + b3_ref[...]           # (TM,128) f32
    # out3: cols 0:8 = actor mean, col 8 = critic value, cols 9: = 0

    # MultivariateNormal(mean, sigma^2 I) log-prob (entropy is constant -> wrapper).
    mean = out3[:, :ACT_DIM]                                     # (TM, 8)
    action = inp[:, OBS_DIM:OBS_DIM + ACT_DIM]                   # f32 (full precision)
    diff = action - mean
    quad = jnp.sum(diff * diff, axis=-1, keepdims=True) * (1.0 / _VAR)   # (TM, 1)
    logp = -0.5 * quad + _LOGP_CONST                             # (TM, 1)

    # Lane-dense full-slab store, then a single narrow store of the logp column.
    out_ref[...] = out3
    out_ref[:, LOGP_COL:LOGP_COL + 1] = logp


# ----------------------------------- wrapper ----------------------------------------
def actor_critic_evaluate(state, action, fused_params, *, block_rows=BLOCK_ROWS):
    """Returns (mean, value, logprob, entropy) matching ActorCritic.evaluate(state,
    action) semantics (plus the actor mean)."""
    B = state.shape[0]
    w1, b1, w2, b2, w3, b3 = fused_params

    tm = min(block_rows, B)
    assert B % tm == 0, "batch must be divisible by the batch tile"
    assert tm == B or tm % 8 == 0, "partial batch tiles must be sublane-aligned"
    grid = (B // tm,)

    # One packed f32 input slab: state lanes 0:32, action lanes 32:40.
    inp = jnp.concatenate(
        [state.astype(jnp.float32), action.astype(jnp.float32)], axis=1)   # (B, 40)

    weight_bytes = sum(int(p.size) * p.dtype.itemsize for p in fused_params)
    cost = pl.CostEstimate(
        flops=2 * B * (IN_W * FUSED_HIDDEN
                       + FUSED_HIDDEN * FUSED_HIDDEN
                       + FUSED_HIDDEN * PACK_W),
        transcendentals=B * 2 * FUSED_HIDDEN,                    # tanh count
        bytes_accessed=int(inp.size) * 4 + weight_bytes + B * PACK_W * 4,
    )

    packed = pl.pallas_call(
        _ac_fused_kernel,
        out_shape=jax.ShapeDtypeStruct((B, PACK_W), jnp.float32),
        grid=grid,
        in_specs=[
            pl.BlockSpec((tm, IN_W), lambda i: (i, 0)),          # packed state|action tile
            pl.BlockSpec(w1.shape, lambda i: (0, 0)),            # resident fused weights
            pl.BlockSpec(b1.shape, lambda i: (0, 0)),
            pl.BlockSpec(w2.shape, lambda i: (0, 0)),
            pl.BlockSpec(b2.shape, lambda i: (0, 0)),
            pl.BlockSpec(w3.shape, lambda i: (0, 0)),
            pl.BlockSpec(b3.shape, lambda i: (0, 0)),
        ],
        out_specs=pl.BlockSpec((tm, PACK_W), lambda i: (i, 0)),  # single lane-dense slab
        compiler_params=pltpu.CompilerParams(
            dimension_semantics=("parallel",)),
        cost_estimate=cost,
    )(inp, w1, b1, w2, b2, w3, b3)

    mean = packed[:, :ACT_DIM]
    value = packed[:, ACT_DIM:ACT_DIM + 1]
    logp = packed[:, LOGP_COL]
    entropy = jnp.full((B,), _ENTROPY_CONST, jnp.float32)        # constant: no kernel work
    return mean, value, logp, entropy


# ------------------------------ parameter handling ----------------------------------
def init_params(key):
    """Deterministic synthetic init. Weights stored as (in, out) = W.T of the
    PyTorch (out, in) Linear weight."""
    shapes = [
        (OBS_DIM, HIDDEN), (1, HIDDEN),     # actor l1
        (HIDDEN, HIDDEN), (1, HIDDEN),      # actor l2
        (HIDDEN, ACT_DIM), (1, ACT_DIM),    # actor l3
        (OBS_DIM, HIDDEN), (1, HIDDEN),     # critic l1
        (HIDDEN, HIDDEN), (1, HIDDEN),      # critic l2
        (HIDDEN, 1), (1, 1),                # critic l3
    ]
    keys = jax.random.split(key, len(shapes))
    params = []
    for k, s in zip(keys, shapes):
        fan_in = s[0] if s[0] > 1 else s[1]
        bound = 1.0 / math.sqrt(max(fan_in, 1))
        params.append(jax.random.uniform(k, s, jnp.float32, -bound, bound))
    return tuple(params)


def fuse_params(params, compute_dtype=jnp.bfloat16):
    """One-time fusion of actor+critic params into 3 MXU-native matrices.
    Matmul operands are cast to compute_dtype (bf16 default); biases stay f32.
      W1: (40, 128)   = [aw1|cw1] in rows 0:32 (action lanes are zero rows)
      W2: (128, 128)  = blockdiag(aw2, cw2)
      W3: (128, 128)  = aw3 in rows 0:64/cols 0:8, cw3 in rows 64:128/col 8, rest 0
    """
    (aw1, ab1, aw2, ab2, aw3, ab3,
     cw1, cb1, cw2, cb2, cw3, cb3) = params

    w1 = jnp.zeros((IN_W, FUSED_HIDDEN), jnp.float32)
    w1 = w1.at[:OBS_DIM, :HIDDEN].set(aw1).at[:OBS_DIM, HIDDEN:].set(cw1)
    b1 = jnp.concatenate([ab1, cb1], axis=1)                       # (1, 128)

    w2 = jnp.zeros((FUSED_HIDDEN, FUSED_HIDDEN), jnp.float32)      # block-diagonal
    w2 = w2.at[:HIDDEN, :HIDDEN].set(aw2).at[HIDDEN:, HIDDEN:].set(cw2)
    b2 = jnp.concatenate([ab2, cb2], axis=1)                       # (1, 128)

    w3 = jnp.zeros((FUSED_HIDDEN, PACK_W), jnp.float32)            # (128, 128)
    w3 = w3.at[:HIDDEN, :ACT_DIM].set(aw3)
    w3 = w3.at[HIDDEN:, ACT_DIM:ACT_DIM + 1].set(cw3)
    b3 = jnp.zeros((1, PACK_W), jnp.float32)
    b3 = b3.at[:, :ACT_DIM].set(ab3).at[:, ACT_DIM:ACT_DIM + 1].set(cb3)

    return (w1.astype(compute_dtype), b1.astype(jnp.float32),
            w2.astype(compute_dtype), b2.astype(jnp.float32),
            w3.astype(compute_dtype), b3.astype(jnp.float32))


# ----------------------------------- reference --------------------------------------
def _reference(state, action, params):
    """Pure-JAX reference (unfused) for a sanity check."""
    (aw1, ab1, aw2, ab2, aw3, ab3,
     cw1, cb1, cw2, cb2, cw3, cb3) = params
    h = jnp.tanh(state @ aw1 + ab1)
    h = jnp.tanh(h @ aw2 + ab2)
    mean = h @ aw3 + ab3
    c = jnp.tanh(state @ cw1 + cb1)
    c = jnp.tanh(c @ cw2 + cb2)
    value = c @ cw3 + cb3
    k = float(ACT_DIM)
    quad = jnp.sum((action - mean) ** 2, axis=-1) / _VAR
    logp = -0.5 * (quad + k * _LOG_2PI + k * math.log(_VAR))
    ent = jnp.full((state.shape[0],), _ENTROPY_CONST, jnp.float32)
    return mean, value, logp, ent


# TODO(synk): ActorCritic.act() samples from MultivariateNormal (dist.sample());
# stochastic sampling is not part of the evaluated forward path and is left out.

if __name__ == "__main__":
    key = jax.random.PRNGKey(0)
    k_params, k_state, k_action = jax.random.split(key, 3)

    params = init_params(k_params)
    state = jax.random.normal(k_state, (BATCH, OBS_DIM), jnp.float32)
    action = jax.random.normal(k_action, (BATCH, ACT_DIM), jnp.float32)

    r_mean, r_value, r_logp, r_ent = _reference(state, action, params)

    # ---- float32 path: exact semantics check ----
    fused_f32 = fuse_params(params, jnp.float32)
    mean, value, logp, ent = actor_critic_evaluate(state, action, fused_f32)
    jax.block_until_ready((mean, value, logp, ent))
    assert jnp.allclose(mean, r_mean, atol=1e-4, rtol=1e-4)
    assert jnp.allclose(value, r_value, atol=1e-4, rtol=1e-4)
    assert jnp.allclose(logp, r_logp, atol=1e-4, rtol=1e-4)
    assert jnp.allclose(ent, r_ent, atol=1e-4, rtol=1e-4)

    # ---- bf16 matmul-operand default path (MXU-native on v5e/v6e/v7x): loose check ----
    fused_bf16 = fuse_params(params)                              # default bf16
    mean_b, value_b, logp_b, ent_b = actor_critic_evaluate(state, action, fused_bf16)
    jax.block_until_ready((mean_b, value_b, logp_b, ent_b))
    assert jnp.allclose(mean_b, r_mean, atol=5e-2, rtol=5e-2)
    assert jnp.allclose(value_b, r_value, atol=5e-2, rtol=5e-2)
    assert jnp.allclose(logp_b, r_logp, atol=5e-1, rtol=1e-1)
    assert jnp.allclose(ent_b, r_ent, atol=1e-4, rtol=1e-4)

    print("KERNEL_OK")
</pallas_src>

<mosaic_0001>
module attributes {stable_mosaic.version = 11 : i64} {
  func.func @_ac_fused_kernel(%arg0: i32, %arg1: memref<256x40xf32, #tpu.memory_space<vmem>>, %arg2: memref<40x128xf32, #tpu.memory_space<vmem>>, %arg3: memref<1x128xf32, #tpu.memory_space<vmem>>, %arg4: memref<128x128xf32, #tpu.memory_space<vmem>>, %arg5: memref<1x128xf32, #tpu.memory_space<vmem>>, %arg6: memref<128x128xf32, #tpu.memory_space<vmem>>, %arg7: memref<1x128xf32, #tpu.memory_space<vmem>>, %arg8: memref<256x128xf32, #tpu.memory_space<vmem>>) attributes {dimension_semantics = [#tpu.dimension_semantics<parallel>], iteration_bounds = array<i64: 1>, scalar_prefetch = 0 : i64, scratch_operands = 0 : i64, tpu.core_type = #tpu.core_type<tc>, window_params = [{transform_indices = @transform_0, window_bounds = array<i64: 256, 40>}, {pipeline_mode = #tpu.pipeline_mode<synchronous>, transform_indices = @transform_1, window_bounds = array<i64: 40, 128>}, {pipeline_mode = #tpu.pipeline_mode<synchronous>, transform_indices = @transform_2, window_bounds = array<i64: 1, 128>}, {pipeline_mode = #tpu.pipeline_mode<synchronous>, transform_indices = @transform_3, window_bounds = array<i64: 128, 128>}, {pipeline_mode = #tpu.pipeline_mode<synchronous>, transform_indices = @transform_4, window_bounds = array<i64: 1, 128>}, {pipeline_mode = #tpu.pipeline_mode<synchronous>, transform_indices = @transform_5, window_bounds = array<i64: 128, 128>}, {pipeline_mode = #tpu.pipeline_mode<synchronous>, transform_indices = @transform_6, window_bounds = array<i64: 1, 128>}, {transform_indices = @transform_7, window_bounds = array<i64: 256, 128>}]} {
    %c0 = arith.constant 0 : index
    %c0_0 = arith.constant 0 : index
    %0 = vector.load %arg1[%c0, %c0_0] : memref<256x40xf32, #tpu.memory_space<vmem>>, vector<256x40xf32>
    %c0_1 = arith.constant 0 : index
    %c0_2 = arith.constant 0 : index
    %1 = vector.load %arg2[%c0_1, %c0_2] : memref<40x128xf32, #tpu.memory_space<vmem>>, vector<40x128xf32>
    %cst = arith.constant dense<0.000000e+00> : vector<256x128xf32>
    %2 = tpu.matmul %0, %1, %cst {dimension_numbers = #tpu.dot_dimension_numbers<[1], [0], [0], [1], [0, 0, 1, 1], [], []>} : vector<256x40xf32>, vector<40x128xf32>, vector<256x128xf32> -> vector<256x128xf32>
    %c0_3 = arith.constant 0 : index
    %c0_4 = arith.constant 0 : index
    %3 = vector.load %arg3[%c0_3, %c0_4] : memref<1x128xf32, #tpu.memory_space<vmem>>, vector<1x128xf32>
    %4 = vector.broadcast %3 : vector<1x128xf32> to vector<256x128xf32>
    %5 = arith.addf %2, %4 : vector<256x128xf32>
    %6 = math.tanh %5 : vector<256x128xf32>
    %c0_5 = arith.constant 0 : index
    %c0_6 = arith.constant 0 : index
    %7 = vector.load %arg4[%c0_5, %c0_6] : memref<128x128xf32, #tpu.memory_space<vmem>>, vector<128x128xf32>
    %cst_7 = arith.constant dense<0.000000e+00> : vector<256x128xf32>
    %8 = tpu.matmul %6, %7, %cst_7 {dimension_numbers = #tpu.dot_dimension_numbers<[1], [0], [0], [1], [0, 0, 1, 1], [], []>} : vector<256x128xf32>, vector<128x128xf32>, vector<256x128xf32> -> vector<256x128xf32>
    %c0_8 = arith.constant 0 : index
    %c0_9 = arith.constant 0 : index
    %9 = vector.load %arg5[%c0_8, %c0_9] : memref<1x128xf32, #tpu.memory_space<vmem>>, vector<1x128xf32>
    %10 = vector.broadcast %9 : vector<1x128xf32> to vector<256x128xf32>
    %11 = arith.addf %8, %10 : vector<256x128xf32>
    %12 = math.tanh %11 : vector<256x128xf32>
    %c0_10 = arith.constant 0 : index
    %c0_11 = arith.constant 0 : index
    %13 = vector.load %arg6[%c0_10, %c0_11] : memref<128x128xf32, #tpu.memory_space<vmem>>, vector<128x128xf32>
    %cst_12 = arith.constant dense<0.000000e+00> : vector<256x128xf32>
    %14 = tpu.matmul %12, %13, %cst_12 {dimension_numbers = #tpu.dot_dimension_numbers<[1], [0], [0], [1], [0, 0, 1, 1], [], []>} : vector<256x128xf32>, vector<128x128xf32>, vector<256x128xf32> -> vector<256x128xf32>
    %c0_13 = arith.constant 0 : index
    %c0_14 = arith.constant 0 : index
    %15 = vector.load %arg7[%c0_13, %c0_14] : memref<1x128xf32, #tpu.memory_space<vmem>>, vector<1x128xf32>
    %16 = vector.broadcast %15 : vector<1x128xf32> to vector<256x128xf32>
    %17 = arith.addf %14, %16 : vector<256x128xf32>
    %18 = vector.extract_strided_slice %17 {offsets = [0, 0], sizes = [256, 8], strides = [1, 1]} : vector<256x128xf32> to vector<256x8xf32>
    %19 = vector.extract_strided_slice %0 {offsets = [0, 32], sizes = [256, 8], strides = [1, 1]} : vector<256x40xf32> to vector<256x8xf32>
    %20 = arith.subf %19, %18 : vector<256x8xf32>
    %21 = arith.mulf %20, %20 : vector<256x8xf32>
    %cst_15 = arith.constant dense<0.000000e+00> : vector<256xf32>
    %22 = vector.multi_reduction <add>, %21, %cst_15 [1] : vector<256x8xf32> to vector<256xf32>
    %23 = vector.shape_cast %22 : vector<256xf32> to vector<256x1xf32>
    %cst_16 = arith.constant 4.000000e+00 : f32
    %24 = vector.broadcast %cst_16 : f32 to vector<256x1xf32>
    %25 = arith.mulf %23, %24 : vector<256x1xf32>
    %cst_17 = arith.constant -5.000000e-01 : f32
    %26 = vector.broadcast %cst_17 : f32 to vector<256x1xf32>
    %27 = arith.mulf %26, %25 : vector<256x1xf32>
    %cst_18 = arith.constant -1.8063308 : f32
    %28 = vector.broadcast %cst_18 : f32 to vector<256x1xf32>
    %29 = arith.addf %27, %28 : vector<256x1xf32>
    %c0_19 = arith.constant 0 : index
    %c0_20 = arith.constant 0 : index
    %30 = vector.load %arg8[%c0_19, %c0_20] : memref<256x128xf32, #tpu.memory_space<vmem>>, vector<256x128xf32>
    tpu.vector_store %arg8[%c0_19, %c0_20], %17 {strides = array<i32>} : memref<256x128xf32, #tpu.memory_space<vmem>>, vector<256x128xf32>,
    %c0_21 = arith.constant 0 : index
    %c9 = arith.constant 9 : index
    %31 = vector.load %arg8[%c0_21, %c9] : memref<256x128xf32, #tpu.memory_space<vmem>>, vector<256x1xf32>
    tpu.vector_store %arg8[%c0_21, %c9], %29 {strides = array<i32>} : memref<256x128xf32, #tpu.memory_space<vmem>>, vector<256x1xf32>,
    return
  }
  func.func @transform_0(%arg0: i32) -> (i32, i32) {
    %c0_i32 = arith.constant 0 : i32
    %c0_i32_0 = arith.constant 0 : i32
    return %arg0, %c0_i32 : i32, i32
  }
  func.func @transform_1(%arg0: i32) -> (i32, i32) {
    %c0_i32 = arith.constant 0 : i32
    %c0_i32_0 = arith.constant 0 : i32
    %c0_i32_1 = arith.constant 0 : i32
    return %c0_i32, %c0_i32_0 : i32, i32
  }
  func.func @transform_2(%arg0: i32) -> (i32, i32) {
    %c0_i32 = arith.constant 0 : i32
    %c0_i32_0 = arith.constant 0 : i32
    %c0_i32_1 = arith.constant 0 : i32
    return %c0_i32, %c0_i32_0 : i32, i32
  }
  func.func @transform_3(%arg0: i32) -> (i32, i32) {
    %c0_i32 = arith.constant 0 : i32
    %c0_i32_0 = arith.constant 0 : i32
    %c0_i32_1 = arith.constant 0 : i32
    return %c0_i32, %c0_i32_0 : i32, i32
  }
  func.func @transform_4(%arg0: i32) -> (i32, i32) {
    %c0_i32 = arith.constant 0 : i32
    %c0_i32_0 = arith.constant 0 : i32
    %c0_i32_1 = arith.constant 0 : i32
    return %c0_i32, %c0_i32_0 : i32, i32
  }
  func.func @transform_5(%arg0: i32) -> (i32, i32) {
    %c0_i32 = arith.constant 0 : i32
    %c0_i32_0 = arith.constant 0 : i32
    %c0_i32_1 = arith.constant 0 : i32
    return %c0_i32, %c0_i32_0 : i32, i32
  }
  func.func @transform_6(%arg0: i32) -> (i32, i32) {
    %c0_i32 = arith.constant 0 : i32
    %c0_i32_0 = arith.constant 0 : i32
    %c0_i32_1 = arith.constant 0 : i32
    return %c0_i32, %c0_i32_0 : i32, i32
  }
  func.func @transform_7(%arg0: i32) -> (i32, i32) {
    %c0_i32 = arith.constant 0 : i32
    %c0_i32_0 = arith.constant 0 : i32
    return %arg0, %c0_i32 : i32, i32
  }
}

</mosaic_0001>

<llo_original>
// kernel: tpu_custom_call.1
$region0: #{tpu_custom_call.1}
  #allocation0 [shape = 'u32[]', space=smem, size = 0x4, offset = 0x4, fixed_abs, tag = 'smem constant byte address 0x4 - core index']
  #allocation1 [shape = 'u32[144,128]{1,0:T(1,128)}', space=vmem, size = 0x12000, scoped, tag = 'internal scratch']
  %s0 = inlined_call_operand.vmem [shape: f32[256,40], index: 0, kind: input, shape index: {}]
  %s1 = inlined_call_operand.vmem [shape: f32[40,128], index: 1, kind: input, shape index: {}]
  %s2 = inlined_call_operand.vmem [shape: f32[1,128], index: 2, kind: input, shape index: {}]
  %s3 = inlined_call_operand.vmem [shape: f32[128,128], index: 3, kind: input, shape index: {}]
  %s4 = inlined_call_operand.vmem [shape: f32[1,128], index: 4, kind: input, shape index: {}]
  %s5 = inlined_call_operand.vmem [shape: f32[128,128], index: 5, kind: input, shape index: {}]
  %s6 = inlined_call_operand.vmem [shape: f32[1,128], index: 6, kind: input, shape index: {}]
  %s7 = inlined_call_operand.hbm [shape: f32[256,128], index: 7, kind: output, shape index: {}]
  %s8 = sld [smem:[#allocation0]]
  $region38: #{tpu_custom_call.1} parent=0
    _
  %s10 = ssub.s32 1, %s8
  %s11 = scalar_select 0, %s10, %s8
  $region1: #{tpu_custom_call.1} parent=0
    #allocation2 [shape = 'u8[131072]{0}', space=vmem, size = 0x20000, scoped, tag = 'output window, operand 0, single buffered']
    #allocation3 [shape = 's32[1]{0}', space=sflag, size = 0x4, scoped, tag = 'scoped memory for tpu_custom_call.1']
    %12 = vsyncpa [#allocation3], 0
    // Predicated region
    $region2: #{tpu_custom_call.1} parent=1 // pred_check
      _
    $region3: #{tpu_custom_call.1} parent=1 // pred_check_branch
      %14 = sbr.rel (0) target = $region5
    $region4: #{tpu_custom_call.1} parent=1 // pred_region
      _
    $region5: #{tpu_custom_call.1} parent=1 // pred_fallthru
      _
    // Predicated region
    $region6: #{tpu_custom_call.1} parent=1 // pred_check
      _
    $region7: #{tpu_custom_call.1} parent=1 // pred_check_branch
      %16 = sbr.rel (0) target = $region9
    $region8: #{tpu_custom_call.1} parent=1 // pred_region
      _
    $region9: #{tpu_custom_call.1} parent=1 // pred_fallthru
      _
    // Predicated region
    $region10: #{tpu_custom_call.1} parent=1 // pred_check
      _
    $region11: #{tpu_custom_call.1} parent=1 // pred_check_branch
      %18 = sbr.rel (0) target = $region13
    $region12: #{tpu_custom_call.1} parent=1 // pred_region
      _
    $region13: #{tpu_custom_call.1} parent=1 // pred_fallthru
      _
    // Predicated region
    $region14: #{tpu_custom_call.1} parent=1 // pred_check
      _
    $region15: #{tpu_custom_call.1} parent=1 // pred_check_branch
      %20 = sbr.rel (0) target = $region17
    $region16: #{tpu_custom_call.1} parent=1 // pred_region
      _
    $region17: #{tpu_custom_call.1} parent=1 // pred_fallthru
      _
    // Predicated region
    $region18: #{tpu_custom_call.1} parent=1 // pred_check
      _
    $region19: #{tpu_custom_call.1} parent=1 // pred_check_branch
      %22 = sbr.rel (0) target = $region21
    $region20: #{tpu_custom_call.1} parent=1 // pred_region
      _
    $region21: #{tpu_custom_call.1} parent=1 // pred_fallthru
      _
    // Predicated region
    $region22: #{tpu_custom_call.1} parent=1 // pred_check
      _
    $region23: #{tpu_custom_call.1} parent=1 // pred_check_branch
      %24 = sbr.rel (0) target = $region25
    $region24: #{tpu_custom_call.1} parent=1 // pred_region
      _
    $region25: #{tpu_custom_call.1} parent=1 // pred_fallthru
      _
    // Predicated region
    $region26: #{tpu_custom_call.1} parent=1 // pred_check
      _
    $region27: #{tpu_custom_call.1} parent=1 // pred_check_branch
      %26 = sbr.rel (0) target = $region29
    $region28: #{tpu_custom_call.1} parent=1 // pred_region
      _
    $region29: #{tpu_custom_call.1} parent=1 // pred_fallthru
      _
    %v27 = vld [vmem:[%s0] sm:$0xff]
    %v28 = vld [vmem:[%s0 + $0x8] sm:$0xff]
    %v29 = vld [vmem:[%s0 + $0x10] sm:$0xff]
    %v30 = vld [vmem:[%s0 + $0x18] sm:$0xff]
    %v31 = vld [vmem:[%s0 + $0x20] sm:$0xff]
    %v32 = vld [vmem:[%s0 + $0x28] sm:$0xff]
    %v33 = vld [vmem:[%s0 + $0x30] sm:$0xff]
    %v34 = vld [vmem:[%s0 + $0x38] sm:$0xff]
    %v35 = vld [vmem:[%s0 + $0x40] sm:$0xff]
    %v36 = vld [vmem:[%s0 + $0x48] sm:$0xff]
    %v37 = vld [vmem:[%s0 + $0x50] sm:$0xff]
    %v38 = vld [vmem:[%s0 + $0x58] sm:$0xff]
    %v39 = vld [vmem:[%s0 + $0x60] sm:$0xff]
    %v40 = vld [vmem:[%s0 + $0x68] sm:$0xff]
    %v41 = vld [vmem:[%s0 + $0x70] sm:$0xff]
    %v42 = vld [vmem:[%s0 + $0x78] sm:$0xff]
    %v43 = vld [vmem:[%s0 + $0x80] sm:$0xff]
    %v44 = vld [vmem:[%s0 + $0x88] sm:$0xff]
    %v45 = vld [vmem:[%s0 + $0x90] sm:$0xff]
    %v46 = vld [vmem:[%s0 + $0x98] sm:$0xff]
    %v47 = vld [vmem:[%s0 + $0xa0] sm:$0xff]
    %v48 = vld [vmem:[%s0 + $0xa8] sm:$0xff]
    %v49 = vld [vmem:[%s0 + $0xb0] sm:$0xff]
    %v50 = vld [vmem:[%s0 + $0xb8] sm:$0xff]
    %v51 = vld [vmem:[%s0 + $0xc0] sm:$0xff]
    %v52 = vld [vmem:[%s0 + $0xc8] sm:$0xff]
    %v53 = vld [vmem:[%s0 + $0xd0] sm:$0xff]
    %v54 = vld [vmem:[%s0 + $0xd8] sm:$0xff]
    %v55 = vld [vmem:[%s0 + $0xe0] sm:$0xff]
    %v56 = vld [vmem:[%s0 + $0xe8] sm:$0xff]
    %v57 = vld [vmem:[%s0 + $0xf0] sm:$0xff]
    %v58 = vld [vmem:[%s0 + $0xf8] sm:$0xff]
    %v59 = vld [vmem:[%s1] sm:$0xff]
    %v60 = vld [vmem:[%s1 + $0x8] sm:$0xff]
    %v61 = vld [vmem:[%s1 + $0x10] sm:$0xff]
    %v62 = vld [vmem:[%s1 + $0x18] sm:$0xff]
    %v63 = vld [vmem:[%s1 + $0x20] sm:$0xff]
    %v64 = vld [vmem:[%s2] sm:$0x1]
    %v66 = vlaneseq
    %v67 = vshrl.u32 %v66, 7
    %v68 = vsub.s32 0, %v67
    %v69 = vrot.slane %v64, %v68
    %vm71 = vcmask 326656
    %v73 = vsel %vm71, %v27, 0
    %v76 = vsel %vm71, %v28, 0
    %v79 = vsel %vm71, %v29, 0
    %v82 = vsel %vm71, %v30, 0
    %v85 = vsel %vm71, %v31, 0
    %v88 = vsel %vm71, %v32, 0
    %v91 = vsel %vm71, %v33, 0
    %v94 = vsel %vm71, %v34, 0
    %v97 = vsel %vm71, %v35, 0
    %v100 = vsel %vm71, %v36, 0
    %v103 = vsel %vm71, %v37, 0
    %v106 = vsel %vm71, %v38, 0
    %v109 = vsel %vm71, %v39, 0
    %v112 = vsel %vm71, %v40, 0
    %v115 = vsel %vm71, %v41, 0
    %v118 = vsel %vm71, %v42, 0
    %v121 = vsel %vm71, %v43, 0
    %v124 = vsel %vm71, %v44, 0
    %v127 = vsel %vm71, %v45, 0
    %v130 = vsel %vm71, %v46, 0
    %v133 = vsel %vm71, %v47, 0
    %v136 = vsel %vm71, %v48, 0
    %v139 = vsel %vm71, %v49, 0
    %v142 = vsel %vm71, %v50, 0
    %v145 = vsel %vm71, %v51, 0
    %v148 = vsel %vm71, %v52, 0
    %v151 = vsel %vm71, %v53, 0
    %v154 = vsel %vm71, %v54, 0
    %v157 = vsel %vm71, %v55, 0
    %v160 = vsel %vm71, %v56, 0
    %v163 = vsel %vm71, %v57, 0
    %v166 = vsel %vm71, %v58, 0
    %168 = vmatprep.subr.mxu0 0.0
    %169 = vmatpush1.msra.mxu0 %v59
    %170 = vmatprep.subr.mxu0 0.0
    %171 = vmatpush1.msra.mxu0 %v60
    %172 = vmatprep.subr.mxu0 0.0
    %173 = vmatpush1.msra.mxu0 %v61
    %174 = vmatprep.subr.mxu0 0.0
    %175 = vmatpush1.msra.mxu0 %v62
    %176 = vmatprep.subr.mxu0 0.0
    %177 = vmatpush1.msra.mxu0 %v63
    %178 = vmatprep.subr.mxu0 0.0
    %179 = vmatpush1.msra.mxu0 0.0
    %180 = vmatprep.subr.mxu0 0.0
    %181 = vmatpush1.msra.mxu0 0.0
    %182 = vmatprep.subr.mxu0 0.0
    %183 = vmatpush1.msra.mxu0 0.0
    %184 = vmatprep.subr.mxu0 0.0
    %185 = vmatpush1.msra.mxu0 0.0
    %186 = vmatprep.subr.mxu0 0.0
    %187 = vmatpush1.msra.mxu0 0.0
    %188 = vmatprep.subr.mxu0 0.0
    %189 = vmatpush1.msra.mxu0 0.0
    %190 = vmatprep.subr.mxu0 0.0
    %191 = vmatpush1.msra.mxu0 0.0
    %192 = vmatprep.subr.mxu0 0.0
    %193 = vmatpush1.msra.mxu0 0.0
    %194 = vmatprep.subr.mxu0 0.0
    %195 = vmatpush1.msra.mxu0 0.0
    %196 = vmatprep.subr.mxu0 0.0
    %197 = vmatpush1.msra.mxu0 0.0
    %198 = vmatprep.subr.mxu0 0.0
    %199 = vmatpush1.msra.mxu0 0.0
    %200 = vmatprep.subr.mxu0 0.0
    %201 = vmatpush1.msra.mxu0 0.0
    %202 = vmatprep.subr.mxu0 0.0
    %203 = vmatpush1.msra.mxu0 0.0
    %204 = vmatprep.subr.mxu0 0.0
    %205 = vmatpush1.msra.mxu0 0.0
    %206 = vmatprep.subr.mxu0 0.0
    %207 = vmatpush1.msra.mxu0 0.0
    %208 = vmatprep.subr.mxu0 0.0
    %209 = vmatpush1.msra.mxu0 0.0
    %210 = vmatprep.subr.mxu0 0.0
    %211 = vmatpush1.msra.mxu0 0.0
    %212 = vmatprep.subr.mxu0 0.0
    %213 = vmatpush1.msra.mxu0 0.0
    %214 = vmatprep.subr.mxu0 0.0
    %215 = vmatpush1.msra.mxu0 0.0
    %216 = vmatprep.subr.mxu0 0.0
    %217 = vmatpush1.msra.mxu0 0.0
    %218 = vmatprep.subr.mxu0 0.0
    %219 = vmatpush1.msra.mxu0 0.0
    %220 = vmatprep.subr.mxu0 0.0
    %221 = vmatpush1.msra.mxu0 0.0
    %222 = vmatprep.subr.mxu0 0.0
    %223 = vmatpush1.msra.mxu0 0.0
    %224 = vmatprep.subr.mxu0 0.0
    %225 = vmatpush1.msra.mxu0 0.0
    %226 = vmatprep.subr.mxu0 0.0
    %227 = vmatpush1.msra.mxu0 0.0
    %228 = vmatprep.subr.mxu0 0.0
    %229 = vmatpush1.msra.mxu0 0.0
    %230 = vmatprep.subr.mxu0 0.0
    %231 = vmatpush1.msra.mxu0 0.0
    %232 = vmatprep.mubr.f32.mxu0 0.0
    %233 = vmatmul.mubr.f32.gmra.mrb[0].mxu0 %v73
    %v234 = vpop.f32.mrb[0].mxu0
    %v235 = vadd.f32 %v69, %v234
    %v236 = vpop.f32.mrb[0].mxu0
    %237 = vmatprep.mubr.f32.mxu0 0.0
    %238 = vmatmul.mubr.f32.gmra.mrb[0].mxu0 %v76
    %v239 = vpop.f32.mrb[0].mxu0
    %v240 = vadd.f32 %v69, %v239
    %v241 = vpop.f32.mrb[0].mxu0
    %242 = vmatprep.mubr.f32.mxu0 0.0
    %243 = vmatmul.mubr.f32.gmra.mrb[0].mxu0 %v79
    %v244 = vpop.f32.mrb[0].mxu0
    %v245 = vadd.f32 %v69, %v244
    %v246 = vpop.f32.mrb[0].mxu0
    %247 = vmatprep.mubr.f32.mxu0 0.0
    %248 = vmatmul.mubr.f32.gmra.mrb[0].mxu0 %v82
    %v249 = vpop.f32.mrb[0].mxu0
    %v250 = vadd.f32 %v69, %v249
    %v251 = vpop.f32.mrb[0].mxu0
    %252 = vmatprep.mubr.f32.mxu0 0.0
    %253 = vmatmul.mubr.f32.gmra.mrb[0].mxu0 %v85
    %v254 = vpop.f32.mrb[0].mxu0
    %v255 = vadd.f32 %v69, %v254
    %v256 = vpop.f32.mrb[0].mxu0
    %257 = vmatprep.mubr.f32.mxu0 0.0
    %258 = vmatmul.mubr.f32.gmra.mrb[0].mxu0 %v88
    %v259 = vpop.f32.mrb[0].mxu0
    %v260 = vadd.f32 %v69, %v259
    %v261 = vpop.f32.mrb[0].mxu0
    %262 = vmatprep.mubr.f32.mxu0 0.0
    %263 = vmatmul.mubr.f32.gmra.mrb[0].mxu0 %v91
    %v264 = vpop.f32.mrb[0].mxu0
    %v265 = vadd.f32 %v69, %v264
    %v266 = vpop.f32.mrb[0].mxu0
    %267 = vmatprep.mubr.f32.mxu0 0.0
    %268 = vmatmul.mubr.f32.gmra.mrb[0].mxu0 %v94
    %v269 = vpop.f32.mrb[0].mxu0
    %v270 = vadd.f32 %v69, %v269
    %v271 = vpop.f32.mrb[0].mxu0
    %272 = vmatprep.mubr.f32.mxu0 0.0
    %273 = vmatmul.mubr.f32.gmra.mrb[0].mxu0 %v97
    %v274 = vpop.f32.mrb[0].mxu0
    %v275 = vadd.f32 %v69, %v274
    %v276 = vpop.f32.mrb[0].mxu0
    %277 = vmatprep.mubr.f32.mxu0 0.0
    %278 = vmatmul.mubr.f32.gmra.mrb[0].mxu0 %v100
    %v279 = vpop.f32.mrb[0].mxu0
    %v280 = vadd.f32 %v69, %v279
    %v281 = vpop.f32.mrb[0].mxu0
    %282 = vmatprep.mubr.f32.mxu0 0.0
    %283 = vmatmul.mubr.f32.gmra.mrb[0].mxu0 %v103
    %v284 = vpop.f32.mrb[0].mxu0
    %v285 = vadd.f32 %v69, %v284
    %v286 = vpop.f32.mrb[0].mxu0
    %287 = vmatprep.mubr.f32.mxu0 0.0
    %288 = vmatmul.mubr.f32.gmra.mrb[0].mxu0 %v106
    %v289 = vpop.f32.mrb[0].mxu0
    %v290 = vadd.f32 %v69, %v289
    %v291 = vpop.f32.mrb[0].mxu0
    %292 = vmatprep.mubr.f32.mxu0 0.0
    %293 = vmatmul.mubr.f32.gmra.mrb[0].mxu0 %v109
    %v294 = vpop.f32.mrb[0].mxu0
    %v295 = vadd.f32 %v69, %v294
    %v296 = vpop.f32.mrb[0].mxu0
    %297 = vmatprep.mubr.f32.mxu0 0.0
    %298 = vmatmul.mubr.f32.gmra.mrb[0].mxu0 %v112
    %v299 = vpop.f32.mrb[0].mxu0
    %v300 = vadd.f32 %v69, %v299
    %v301 = vpop.f32.mrb[0].mxu0
    %302 = vmatprep.mubr.f32.mxu0 0.0
    %303 = vmatmul.mubr.f32.gmra.mrb[0].mxu0 %v115
    %v304 = vpop.f32.mrb[0].mxu0
    %v305 = vadd.f32 %v69, %v304
    %v306 = vpop.f32.mrb[0].mxu0
    %307 = vmatprep.mubr.f32.mxu0 0.0
    %308 = vmatmul.mubr.f32.gmra.mrb[0].mxu0 %v118
    %v309 = vpop.f32.mrb[0].mxu0
    %v310 = vadd.f32 %v69, %v309
    %v311 = vpop.f32.mrb[0].mxu0
    %312 = vmatprep.mubr.f32.mxu0 0.0
    %313 = vmatmul.mubr.f32.gmra.mrb[0].mxu0 %v121
    %v314 = vpop.f32.mrb[0].mxu0
    %v315 = vadd.f32 %v69, %v314
    %v316 = vpop.f32.mrb[0].mxu0
    %317 = vmatprep.mubr.f32.mxu0 0.0
    %318 = vmatmul.mubr.f32.gmra.mrb[0].mxu0 %v124
    %v319 = vpop.f32.mrb[0].mxu0
    %v320 = vadd.f32 %v69, %v319
    %v321 = vpop.f32.mrb[0].mxu0
    %322 = vmatprep.mubr.f32.mxu0 0.0
    %323 = vmatmul.mubr.f32.gmra.mrb[0].mxu0 %v127
    %v324 = vpop.f32.mrb[0].mxu0
    %v325 = vadd.f32 %v69, %v324
    %v326 = vpop.f32.mrb[0].mxu0
    %327 = vmatprep.mubr.f32.mxu0 0.0
    %328 = vmatmul.mubr.f32.gmra.mrb[0].mxu0 %v130
    %v329 = vpop.f32.mrb[0].mxu0
    %v330 = vadd.f32 %v69, %v329
    %v331 = vpop.f32.mrb[0].mxu0
    %332 = vmatprep.mubr.f32.mxu0 0.0
    %333 = vmatmul.mubr.f32.gmra.mrb[0].mxu0 %v133
    %v334 = vpop.f32.mrb[0].mxu0
    %v335 = vadd.f32 %v69, %v334
    %v336 = vpop.f32.mrb[0].mxu0
    %337 = vmatprep.mubr.f32.mxu0 0.0
    %338 = vmatmul.mubr.f32.gmra.mrb[0].mxu0 %v136
    %v339 = vpop.f32.mrb[0].mxu0
    %v340 = vadd.f32 %v69, %v339
    %v341 = vpop.f32.mrb[0].mxu0
    %342 = vmatprep.mubr.f32.mxu0 0.0
    %343 = vmatmul.mubr.f32.gmra.mrb[0].mxu0 %v139
    %v344 = vpop.f32.mrb[0].mxu0
    %v345 = vadd.f32 %v69, %v344
    %v346 = vpop.f32.mrb[0].mxu0
    %347 = vmatprep.mubr.f32.mxu0 0.0
    %348 = vmatmul.mubr.f32.gmra.mrb[0].mxu0 %v142
    %v349 = vpop.f32.mrb[0].mxu0
    %v350 = vadd.f32 %v69, %v349
    %v351 = vpop.f32.mrb[0].mxu0
    %352 = vmatprep.mubr.f32.mxu0 0.0
    %353 = vmatmul.mubr.f32.gmra.mrb[0].mxu0 %v145
    %v354 = vpop.f32.mrb[0].mxu0
    %v355 = vadd.f32 %v69, %v354
    %v356 = vpop.f32.mrb[0].mxu0
    %357 = vmatprep.mubr.f32.mxu0 0.0
    %358 = vmatmul.mubr.f32.gmra.mrb[0].mxu0 %v148
    %v359 = vpop.f32.mrb[0].mxu0
    %v360 = vadd.f32 %v69, %v359
    %v361 = vpop.f32.mrb[0].mxu0
    %362 = vmatprep.mubr.f32.mxu0 0.0
    %363 = vmatmul.mubr.f32.gmra.mrb[0].mxu0 %v151
    %v364 = vpop.f32.mrb[0].mxu0
    %v365 = vadd.f32 %v69, %v364
    %v366 = vpop.f32.mrb[0].mxu0
    %367 = vmatprep.mubr.f32.mxu0 0.0
    %368 = vmatmul.mubr.f32.gmra.mrb[0].mxu0 %v154
    %v369 = vpop.f32.mrb[0].mxu0
    %v370 = vadd.f32 %v69, %v369
    %v371 = vpop.f32.mrb[0].mxu0
    %372 = vmatprep.mubr.f32.mxu0 0.0
    %373 = vmatmul.mubr.f32.gmra.mrb[0].mxu0 %v157
    %v374 = vpop.f32.mrb[0].mxu0
    %v375 = vadd.f32 %v69, %v374
    %v376 = vpop.f32.mrb[0].mxu0
    %377 = vmatprep.mubr.f32.mxu0 0.0
    %378 = vmatmul.mubr.f32.gmra.mrb[0].mxu0 %v160
    %v379 = vpop.f32.mrb[0].mxu0
    %v380 = vadd.f32 %v69, %v379
    %v381 = vpop.f32.mrb[0].mxu0
    %382 = vmatprep.mubr.f32.mxu0 0.0
    %383 = vmatmul.mubr.f32.gmra.mrb[0].mxu0 %v163
    %v384 = vpop.f32.mrb[0].mxu0
    %v385 = vadd.f32 %v69, %v384
    %v386 = vpop.f32.mrb[0].mxu0
    %387 = vmatprep.mubr.f32.mxu0 0.0
    %388 = vmatmul.mubr.f32.gmra.mrb[0].mxu0 %v166
    %v389 = vpop.f32.mrb[0].mxu0
    %v390 = vadd.f32 %v69, %v389
    %v391 = vpop.f32.mrb[0].mxu0
    %392 = vdwg.mxu0
    %v393 = vtanh.pop %v235
    %v394 = vtanh.pop %v240
    %v395 = vtanh.pop %v245
    %v396 = vtanh.pop %v250
    %v397 = vtanh.pop %v255
    %v398 = vtanh.pop %v260
    %v399 = vtanh.pop %v265
    %v400 = vtanh.pop %v270
    %v401 = vtanh.pop %v275
    %v402 = vtanh.pop %v280
    %v403 = vtanh.pop %v285
    %v404 = vtanh.pop %v290
    %v405 = vtanh.pop %v295
    %v406 = vtanh.pop %v300
    %v407 = vtanh.pop %v305
    %v408 = vtanh.pop %v310
    %v409 = vtanh.pop %v315
    %v410 = vtanh.pop %v320
    %v411 = vtanh.pop %v325
    %v412 = vtanh.pop %v330
    %v413 = vtanh.pop %v335
    %v414 = vtanh.pop %v340
    %v415 = vtanh.pop %v345
    %v416 = vtanh.pop %v350
    %v417 = vtanh.pop %v355
    %v418 = vtanh.pop %v360
    %v419 = vtanh.pop %v365
    %v420 = vtanh.pop %v370
    %v421 = vtanh.pop %v375
    %v422 = vtanh.pop %v380
    %v423 = vtanh.pop %v385
    %v424 = vtanh.pop %v390
    %v425 = vld [vmem:[%s3] sm:$0xff]
    %v426 = vld [vmem:[%s3 + $0x8] sm:$0xff]
    %v427 = vld [vmem:[%s3 + $0x10] sm:$0xff]
    %v428 = vld [vmem:[%s3 + $0x18] sm:$0xff]
    %v429 = vld [vmem:[%s3 + $0x20] sm:$0xff]
    %v430 = vld [vmem:[%s3 + $0x28] sm:$0xff]
    %v431 = vld [vmem:[%s3 + $0x30] sm:$0xff]
    %v432 = vld [vmem:[%s3 + $0x38] sm:$0xff]
    %v433 = vld [vmem:[%s3 + $0x40] sm:$0xff]
    %v434 = vld [vmem:[%s3 + $0x48] sm:$0xff]
    %v435 = vld [vmem:[%s3 + $0x50] sm:$0xff]
    %v436 = vld [vmem:[%s3 + $0x58] sm:$0xff]
    %v437 = vld [vmem:[%s3 + $0x60] sm:$0xff]
    %v438 = vld [vmem:[%s3 + $0x68] sm:$0xff]
    %v439 = vld [vmem:[%s3 + $0x70] sm:$0xff]
    %v440 = vld [vmem:[%s3 + $0x78] sm:$0xff]
    %v441 = vld [vmem:[%s4] sm:$0x1]
    %v443 = vlaneseq
    %v444 = vshrl.u32 %v443, 7
    %v445 = vsub.s32 0, %v444
    %v446 = vrot.slane %v441, %v445
    %448 = vmatprep.subr.mxu0 0.0
    %449 = vmatpush1.msra.mxu0 %v425
    %450 = vmatprep.subr.mxu0 0.0
    %451 = vmatpush1.msra.mxu0 %v426
    %452 = vmatprep.subr.mxu0 0.0
    %453 = vmatpush1.msra.mxu0 %v427
    %454 = vmatprep.subr.mxu0 0.0
    %455 = vmatpush1.msra.mxu0 %v428
    %456 = vmatprep.subr.mxu0 0.0
    %457 = vmatpush1.msra.mxu0 %v429
    %458 = vmatprep.subr.mxu0 0.0
    %459 = vmatpush1.msra.mxu0 %v430
    %460 = vmatprep.subr.mxu0 0.0
    %461 = vmatpush1.msra.mxu0 %v431
    %462 = vmatprep.subr.mxu0 0.0
    %463 = vmatpush1.msra.mxu0 %v432
    %464 = vmatprep.subr.mxu0 0.0
    %465 = vmatpush1.msra.mxu0 %v433
    %466 = vmatprep.subr.mxu0 0.0
    %467 = vmatpush1.msra.mxu0 %v434
    %468 = vmatprep.subr.mxu0 0.0
    %469 = vmatpush1.msra.mxu0 %v435
    %470 = vmatprep.subr.mxu0 0.0
    %471 = vmatpush1.msra.mxu0 %v436
    %472 = vmatprep.subr.mxu0 0.0
    %473 = vmatpush1.msra.mxu0 %v437
    %474 = vmatprep.subr.mxu0 0.0
    %475 = vmatpush1.msra.mxu0 %v438
    %476 = vmatprep.subr.mxu0 0.0
    %477 = vmatpush1.msra.mxu0 %v439
    %478 = vmatprep.subr.mxu0 0.0
    %479 = vmatpush1.msra.mxu0 %v440
    %480 = vmatprep.subr.mxu0 0.0
    %481 = vmatpush1.msra.mxu0 0.0
    %482 = vmatprep.subr.mxu0 0.0
    %483 = vmatpush1.msra.mxu0 0.0
    %484 = vmatprep.subr.mxu0 0.0
    %485 = vmatpush1.msra.mxu0 0.0
    %486 = vmatprep.subr.mxu0 0.0
    %487 = vmatpush1.msra.mxu0 0.0
    %488 = vmatprep.subr.mxu0 0.0
    %489 = vmatpush1.msra.mxu0 0.0
    %490 = vmatprep.subr.mxu0 0.0
    %491 = vmatpush1.msra.mxu0 0.0
    %492 = vmatprep.subr.mxu0 0.0
    %493 = vmatpush1.msra.mxu0 0.0
    %494 = vmatprep.subr.mxu0 0.0
    %495 = vmatpush1.msra.mxu0 0.0
    %496 = vmatprep.subr.mxu0 0.0
    %497 = vmatpush1.msra.mxu0 0.0
    %498 = vmatprep.subr.mxu0 0.0
    %499 = vmatpush1.msra.mxu0 0.0
    %500 = vmatprep.subr.mxu0 0.0
    %501 = vmatpush1.msra.mxu0 0.0
    %502 = vmatprep.subr.mxu0 0.0
    %503 = vmatpush1.msra.mxu0 0.0
    %504 = vmatprep.subr.mxu0 0.0
    %505 = vmatpush1.msra.mxu0 0.0
    %506 = vmatprep.subr.mxu0 0.0
    %507 = vmatpush1.msra.mxu0 0.0
    %508 = vmatprep.subr.mxu0 0.0
    %509 = vmatpush1.msra.mxu0 0.0
    %510 = vmatprep.subr.mxu0 0.0
    %511 = vmatpush1.msra.mxu0 0.0
    %512 = vmatprep.mubr.f32.mxu0 0.0
    %513 = vmatmul.mubr.f32.gmra.mrb[0].mxu0 %v393
    %v514 = vpop.f32.mrb[0].mxu0
    %v515 = vadd.f32 %v446, %v514
    %v516 = vpop.f32.mrb[0].mxu0
    %517 = vmatprep.mubr.f32.mxu0 0.0
    %518 = vmatmul.mubr.f32.gmra.mrb[0].mxu0 %v394
    %v519 = vpop.f32.mrb[0].mxu0
    %v520 = vadd.f32 %v446, %v519
    %v521 = vpop.f32.mrb[0].mxu0
    %522 = vmatprep.mubr.f32.mxu0 0.0
    %523 = vmatmul.mubr.f32.gmra.mrb[0].mxu0 %v395
    %v524 = vpop.f32.mrb[0].mxu0
    %v525 = vadd.f32 %v446, %v524
    %v526 = vpop.f32.mrb[0].mxu0
    %527 = vmatprep.mubr.f32.mxu0 0.0
    %528 = vmatmul.mubr.f32.gmra.mrb[0].mxu0 %v396
    %v529 = vpop.f32.mrb[0].mxu0
    %v530 = vadd.f32 %v446, %v529
    %v531 = vpop.f32.mrb[0].mxu0
    %532 = vmatprep.mubr.f32.mxu0 0.0
    %533 = vmatmul.mubr.f32.gmra.mrb[0].mxu0 %v397
    %v534 = vpop.f32.mrb[0].mxu0
    %v535 = vadd.f32 %v446, %v534
    %v536 = vpop.f32.mrb[0].mxu0
    %537 = vmatprep.mubr.f32.mxu0 0.0
    %538 = vmatmul.mubr.f32.gmra.mrb[0].mxu0 %v398
    %v539 = vpop.f32.mrb[0].mxu0
    %v540 = vadd.f32 %v446, %v539
    %v541 = vpop.f32.mrb[0].mxu0
    %542 = vmatprep.mubr.f32.mxu0 0.0
    %543 = vmatmul.mubr.f32.gmra.mrb[0].mxu0 %v399
    %v544 = vpop.f32.mrb[0].mxu0
    %v545 = vadd.f32 %v446, %v544
    %v546 = vpop.f32.mrb[0].mxu0
    %547 = vmatprep.mubr.f32.mxu0 0.0
    %548 = vmatmul.mubr.f32.gmra.mrb[0].mxu0 %v400
    %v549 = vpop.f32.mrb[0].mxu0
    %v550 = vadd.f32 %v446, %v549
    %v551 = vpop.f32.mrb[0].mxu0
    %552 = vmatprep.mubr.f32.mxu0 0.0
    %553 = vmatmul.mubr.f32.gmra.mrb[0].mxu0 %v401
    %v554 = vpop.f32.mrb[0].mxu0
    %v555 = vadd.f32 %v446, %v554
    %v556 = vpop.f32.mrb[0].mxu0
    %557 = vmatprep.mubr.f32.mxu0 0.0
    %558 = vmatmul.mubr.f32.gmra.mrb[0].mxu0 %v402
    %v559 = vpop.f32.mrb[0].mxu0
    %v560 = vadd.f32 %v446, %v559
    %v561 = vpop.f32.mrb[0].mxu0
    %562 = vmatprep.mubr.f32.mxu0 0.0
    %563 = vmatmul.mubr.f32.gmra.mrb[0].mxu0 %v403
    %v564 = vpop.f32.mrb[0].mxu0
    %v565 = vadd.f32 %v446, %v564
    %v566 = vpop.f32.mrb[0].mxu0
    %567 = vmatprep.mubr.f32.mxu0 0.0
    %568 = vmatmul.mubr.f32.gmra.mrb[0].mxu0 %v404
    %v569 = vpop.f32.mrb[0].mxu0
    %v570 = vadd.f32 %v446, %v569
    %v571 = vpop.f32.mrb[0].mxu0
    %572 = vmatprep.mubr.f32.mxu0 0.0
    %573 = vmatmul.mubr.f32.gmra.mrb[0].mxu0 %v405
    %v574 = vpop.f32.mrb[0].mxu0
    %v575 = vadd.f32 %v446, %v574
    %v576 = vpop.f32.mrb[0].mxu0
    %577 = vmatprep.mubr.f32.mxu0 0.0
    %578 = vmatmul.mubr.f32.gmra.mrb[0].mxu0 %v406
    %v579 = vpop.f32.mrb[0].mxu0
    %v580 = vadd.f32 %v446, %v579
    %v581 = vpop.f32.mrb[0].mxu0
    %582 = vmatprep.mubr.f32.mxu0 0.0
    %583 = vmatmul.mubr.f32.gmra.mrb[0].mxu0 %v407
    %v584 = vpop.f32.mrb[0].mxu0
    %v585 = vadd.f32 %v446, %v584
    %v586 = vpop.f32.mrb[0].mxu0
    %587 = vmatprep.mubr.f32.mxu0 0.0
    %588 = vmatmul.mubr.f32.gmra.mrb[0].mxu0 %v408
    %v589 = vpop.f32.mrb[0].mxu0
    %v590 = vadd.f32 %v446, %v589
    %v591 = vpop.f32.mrb[0].mxu0
    %592 = vmatprep.mubr.f32.mxu0 0.0
    %593 = vmatmul.mubr.f32.gmra.mrb[0].mxu0 %v409
    %v594 = vpop.f32.mrb[0].mxu0
    %v595 = vadd.f32 %v446, %v594
    %v596 = vpop.f32.mrb[0].mxu0
    %597 = vmatprep.mubr.f32.mxu0 0.0
    %598 = vmatmul.mubr.f32.gmra.mrb[0].mxu0 %v410
    %v599 = vpop.f32.mrb[0].mxu0
    %v600 = vadd.f32 %v446, %v599
    %v601 = vpop.f32.mrb[0].mxu0
    %602 = vmatprep.mubr.f32.mxu0 0.0
    %603 = vmatmul.mubr.f32.gmra.mrb[0].mxu0 %v411
    %v604 = vpop.f32.mrb[0].mxu0
    %v605 = vadd.f32 %v446, %v604
    %v606 = vpop.f32.mrb[0].mxu0
    %607 = vmatprep.mubr.f32.mxu0 0.0
    %608 = vmatmul.mubr.f32.gmra.mrb[0].mxu0 %v412
    %v609 = vpop.f32.mrb[0].mxu0
    %v610 = vadd.f32 %v446, %v609
    %v611 = vpop.f32.mrb[0].mxu0
    %612 = vmatprep.mubr.f32.mxu0 0.0
    %613 = vmatmul.mubr.f32.gmra.mrb[0].mxu0 %v413
    %v614 = vpop.f32.mrb[0].mxu0
    %v615 = vadd.f32 %v446, %v614
    %v616 = vpop.f32.mrb[0].mxu0
    %617 = vmatprep.mubr.f32.mxu0 0.0
    %618 = vmatmul.mubr.f32.gmra.mrb[0].mxu0 %v414
    %v619 = vpop.f32.mrb[0].mxu0
    %v620 = vadd.f32 %v446, %v619
    %v621 = vpop.f32.mrb[0].mxu0
    %622 = vmatprep.mubr.f32.mxu0 0.0
    %623 = vmatmul.mubr.f32.gmra.mrb[0].mxu0 %v415
    %v624 = vpop.f32.mrb[0].mxu0
    %v625 = vadd.f32 %v446, %v624
    %v626 = vpop.f32.mrb[0].mxu0
    %627 = vmatprep.mubr.f32.mxu0 0.0
    %628 = vmatmul.mubr.f32.gmra.mrb[0].mxu0 %v416
    %v629 = vpop.f32.mrb[0].mxu0
    %v630 = vadd.f32 %v446, %v629
    %v631 = vpop.f32.mrb[0].mxu0
    %632 = vmatprep.mubr.f32.mxu0 0.0
    %633 = vmatmul.mubr.f32.gmra.mrb[0].mxu0 %v417
    %v634 = vpop.f32.mrb[0].mxu0
    %v635 = vadd.f32 %v446, %v634
    %v636 = vpop.f32.mrb[0].mxu0
    %637 = vmatprep.mubr.f32.mxu0 0.0
    %638 = vmatmul.mubr.f32.gmra.mrb[0].mxu0 %v418
    %v639 = vpop.f32.mrb[0].mxu0
    %v640 = vadd.f32 %v446, %v639
    %v641 = vpop.f32.mrb[0].mxu0
    %642 = vmatprep.mubr.f32.mxu0 0.0
    %643 = vmatmul.mubr.f32.gmra.mrb[0].mxu0 %v419
    %v644 = vpop.f32.mrb[0].mxu0
    %v645 = vadd.f32 %v446, %v644
    %v646 = vpop.f32.mrb[0].mxu0
    %647 = vmatprep.mubr.f32.mxu0 0.0
    %648 = vmatmul.mubr.f32.gmra.mrb[0].mxu0 %v420
    %v649 = vpop.f32.mrb[0].mxu0
    %v650 = vadd.f32 %v446, %v649
    %v651 = vpop.f32.mrb[0].mxu0
    %652 = vmatprep.mubr.f32.mxu0 0.0
    %653 = vmatmul.mubr.f32.gmra.mrb[0].mxu0 %v421
    %v654 = vpop.f32.mrb[0].mxu0
    %v655 = vadd.f32 %v446, %v654
    %v656 = vpop.f32.mrb[0].mxu0
    %657 = vmatprep.mubr.f32.mxu0 0.0
    %658 = vmatmul.mubr.f32.gmra.mrb[0].mxu0 %v422
    %v659 = vpop.f32.mrb[0].mxu0
    %v660 = vadd.f32 %v446, %v659
    %v661 = vpop.f32.mrb[0].mxu0
    %662 = vmatprep.mubr.f32.mxu0 0.0
    %663 = vmatmul.mubr.f32.gmra.mrb[0].mxu0 %v423
    %v664 = vpop.f32.mrb[0].mxu0
    %v665 = vadd.f32 %v446, %v664
    %v666 = vpop.f32.mrb[0].mxu0
    %667 = vmatprep.mubr.f32.mxu0 0.0
    %668 = vmatmul.mubr.f32.gmra.mrb[0].mxu0 %v424
    %v669 = vpop.f32.mrb[0].mxu0
    %v670 = vadd.f32 %v446, %v669
    %v671 = vpop.f32.mrb[0].mxu0
    %672 = vdwg.mxu0
    %v673 = vtanh.pop %v515
    %v674 = vtanh.pop %v520
    %v675 = vtanh.pop %v525
    %v676 = vtanh.pop %v530
    %v677 = vtanh.pop %v535
    %v678 = vtanh.pop %v540
    %v679 = vtanh.pop %v545
    %v680 = vtanh.pop %v550
    %v681 = vtanh.pop %v555
    %v682 = vtanh.pop %v560
    %v683 = vtanh.pop %v565
    %v684 = vtanh.pop %v570
    %v685 = vtanh.pop %v575
    %v686 = vtanh.pop %v580
    %v687 = vtanh.pop %v585
    %v688 = vtanh.pop %v590
    %v689 = vtanh.pop %v595
    %v690 = vtanh.pop %v600
    %v691 = vtanh.pop %v605
    %v692 = vtanh.pop %v610
    %v693 = vtanh.pop %v615
    %v694 = vtanh.pop %v620
    %v695 = vtanh.pop %v625
    %v696 = vtanh.pop %v630
    %v697 = vtanh.pop %v635
    %v698 = vtanh.pop %v640
    %v699 = vtanh.pop %v645
    %v700 = vtanh.pop %v650
    %v701 = vtanh.pop %v655
    %v702 = vtanh.pop %v660
    %v703 = vtanh.pop %v665
    %v704 = vtanh.pop %v670
    %v705 = vld [vmem:[%s5] sm:$0xff]
    %v706 = vld [vmem:[%s5 + $0x8] sm:$0xff]
    %v707 = vld [vmem:[%s5 + $0x10] sm:$0xff]
    %v708 = vld [vmem:[%s5 + $0x18] sm:$0xff]
    %v709 = vld [vmem:[%s5 + $0x20] sm:$0xff]
    %v710 = vld [vmem:[%s5 + $0x28] sm:$0xff]
    %v711 = vld [vmem:[%s5 + $0x30] sm:$0xff]
    %v712 = vld [vmem:[%s5 + $0x38] sm:$0xff]
    %v713 = vld [vmem:[%s5 + $0x40] sm:$0xff]
    %v714 = vld [vmem:[%s5 + $0x48] sm:$0xff]
    %v715 = vld [vmem:[%s5 + $0x50] sm:$0xff]
    %v716 = vld [vmem:[%s5 + $0x58] sm:$0xff]
    %v717 = vld [vmem:[%s5 + $0x60] sm:$0xff]
    %v718 = vld [vmem:[%s5 + $0x68] sm:$0xff]
    %v719 = vld [vmem:[%s5 + $0x70] sm:$0xff]
    %v720 = vld [vmem:[%s5 + $0x78] sm:$0xff]
    %v721 = vld [vmem:[%s6] sm:$0x1]
    %v723 = vlaneseq
    %v724 = vshrl.u32 %v723, 7
    %v725 = vsub.s32 0, %v724
    %v726 = vrot.slane %v721, %v725
    %728 = vmatprep.subr.mxu0 0.0
    %729 = vmatpush1.msra.mxu0 %v705
    %730 = vmatprep.subr.mxu0 0.0
    %731 = vmatpush1.msra.mxu0 %v706
    %732 = vmatprep.subr.mxu0 0.0
    %733 = vmatpush1.msra.mxu0 %v707
    %734 = vmatprep.subr.mxu0 0.0
    %735 = vmatpush1.msra.mxu0 %v708
    %736 = vmatprep.subr.mxu0 0.0
    %737 = vmatpush1.msra.mxu0 %v709
    %738 = vmatprep.subr.mxu0 0.0
    %739 = vmatpush1.msra.mxu0 %v710
    %740 = vmatprep.subr.mxu0 0.0
    %741 = vmatpush1.msra.mxu0 %v711
    %742 = vmatprep.subr.mxu0 0.0
    %743 = vmatpush1.msra.mxu0 %v712
    %744 = vmatprep.subr.mxu0 0.0
    %745 = vmatpush1.msra.mxu0 %v713
    %746 = vmatprep.subr.mxu0 0.0
    %747 = vmatpush1.msra.mxu0 %v714
    %748 = vmatprep.subr.mxu0 0.0
    %749 = vmatpush1.msra.mxu0 %v715
    %750 = vmatprep.subr.mxu0 0.0
    %751 = vmatpush1.msra.mxu0 %v716
    %752 = vmatprep.subr.mxu0 0.0
    %753 = vmatpush1.msra.mxu0 %v717
    %754 = vmatprep.subr.mxu0 0.0
    %755 = vmatpush1.msra.mxu0 %v718
    %756 = vmatprep.subr.mxu0 0.0
    %757 = vmatpush1.msra.mxu0 %v719
    %758 = vmatprep.subr.mxu0 0.0
    %759 = vmatpush1.msra.mxu0 %v720
    %760 = vmatprep.subr.mxu0 0.0
    %761 = vmatpush1.msra.mxu0 0.0
    %762 = vmatprep.subr.mxu0 0.0
    %763 = vmatpush1.msra.mxu0 0.0
    %764 = vmatprep.subr.mxu0 0.0
    %765 = vmatpush1.msra.mxu0 0.0
    %766 = vmatprep.subr.mxu0 0.0
    %767 = vmatpush1.msra.mxu0 0.0
    %768 = vmatprep.subr.mxu0 0.0
    %769 = vmatpush1.msra.mxu0 0.0
    %770 = vmatprep.subr.mxu0 0.0
    %771 = vmatpush1.msra.mxu0 0.0
    %772 = vmatprep.subr.mxu0 0.0
    %773 = vmatpush1.msra.mxu0 0.0
    %774 = vmatprep.subr.mxu0 0.0
    %775 = vmatpush1.msra.mxu0 0.0
    %776 = vmatprep.subr.mxu0 0.0
    %777 = vmatpush1.msra.mxu0 0.0
    %778 = vmatprep.subr.mxu0 0.0
    %779 = vmatpush1.msra.mxu0 0.0
    %780 = vmatprep.subr.mxu0 0.0
    %781 = vmatpush1.msra.mxu0 0.0
    %782 = vmatprep.subr.mxu0 0.0
    %783 = vmatpush1.msra.mxu0 0.0
    %784 = vmatprep.subr.mxu0 0.0
    %785 = vmatpush1.msra.mxu0 0.0
    %786 = vmatprep.subr.mxu0 0.0
    %787 = vmatpush1.msra.mxu0 0.0
    %788 = vmatprep.subr.mxu0 0.0
    %789 = vmatpush1.msra.mxu0 0.0
    %790 = vmatprep.subr.mxu0 0.0
    %791 = vmatpush1.msra.mxu0 0.0
    %792 = vmatprep.mubr.f32.mxu0 0.0
    %793 = vmatmul.mubr.f32.gmra.mrb[0].mxu0 %v673
    %v794 = vpop.f32.mrb[0].mxu0
    %v795 = vadd.f32 %v726, %v794
    %v796 = vpop.f32.mrb[0].mxu0
    %797 = vmatprep.mubr.f32.mxu0 0.0
    %798 = vmatmul.mubr.f32.gmra.mrb[0].mxu0 %v674
    %v799 = vpop.f32.mrb[0].mxu0
    %v800 = vadd.f32 %v726, %v799
    %v801 = vpop.f32.mrb[0].mxu0
    %802 = vmatprep.mubr.f32.mxu0 0.0
    %803 = vmatmul.mubr.f32.gmra.mrb[0].mxu0 %v675
    %v804 = vpop.f32.mrb[0].mxu0
    %v805 = vadd.f32 %v726, %v804
    %v806 = vpop.f32.mrb[0].mxu0
    %807 = vmatprep.mubr.f32.mxu0 0.0
    %808 = vmatmul.mubr.f32.gmra.mrb[0].mxu0 %v676
    %v809 = vpop.f32.mrb[0].mxu0
    %v810 = vadd.f32 %v726, %v809
    %v811 = vpop.f32.mrb[0].mxu0
    %812 = vmatprep.mubr.f32.mxu0 0.0
    %813 = vmatmul.mubr.f32.gmra.mrb[0].mxu0 %v677
    %v814 = vpop.f32.mrb[0].mxu0
    %v815 = vadd.f32 %v726, %v814
    %v816 = vpop.f32.mrb[0].mxu0
    %817 = vmatprep.mubr.f32.mxu0 0.0
    %818 = vmatmul.mubr.f32.gmra.mrb[0].mxu0 %v678
    %v819 = vpop.f32.mrb[0].mxu0
    %v820 = vadd.f32 %v726, %v819
    %v821 = vpop.f32.mrb[0].mxu0
    %822 = vmatprep.mubr.f32.mxu0 0.0
    %823 = vmatmul.mubr.f32.gmra.mrb[0].mxu0 %v679
    %v824 = vpop.f32.mrb[0].mxu0
    %v825 = vadd.f32 %v726, %v824
    %v826 = vpop.f32.mrb[0].mxu0
    %827 = vmatprep.mubr.f32.mxu0 0.0
    %828 = vmatmul.mubr.f32.gmra.mrb[0].mxu0 %v680
    %v829 = vpop.f32.mrb[0].mxu0
    %v830 = vadd.f32 %v726, %v829
    %v831 = vpop.f32.mrb[0].mxu0
    %832 = vmatprep.mubr.f32.mxu0 0.0
    %833 = vmatmul.mubr.f32.gmra.mrb[0].mxu0 %v681
    %v834 = vpop.f32.mrb[0].mxu0
    %v835 = vadd.f32 %v726, %v834
    %v836 = vpop.f32.mrb[0].mxu0
    %837 = vmatprep.mubr.f32.mxu0 0.0
    %838 = vmatmul.mubr.f32.gmra.mrb[0].mxu0 %v682
    %v839 = vpop.f32.mrb[0].mxu0
    %v840 = vadd.f32 %v726, %v839
    %v841 = vpop.f32.mrb[0].mxu0
    %842 = vmatprep.mubr.f32.mxu0 0.0
    %843 = vmatmul.mubr.f32.gmra.mrb[0].mxu0 %v683
    %v844 = vpop.f32.mrb[0].mxu0
    %v845 = vadd.f32 %v726, %v844
    %v846 = vpop.f32.mrb[0].mxu0
    %847 = vmatprep.mubr.f32.mxu0 0.0
    %848 = vmatmul.mubr.f32.gmra.mrb[0].mxu0 %v684
    %v849 = vpop.f32.mrb[0].mxu0
    %v850 = vadd.f32 %v726, %v849
    %v851 = vpop.f32.mrb[0].mxu0
    %852 = vmatprep.mubr.f32.mxu0 0.0
    %853 = vmatmul.mubr.f32.gmra.mrb[0].mxu0 %v685
    %v854 = vpop.f32.mrb[0].mxu0
    %v855 = vadd.f32 %v726, %v854
    %v856 = vpop.f32.mrb[0].mxu0
    %857 = vmatprep.mubr.f32.mxu0 0.0
    %858 = vmatmul.mubr.f32.gmra.mrb[0].mxu0 %v686
    %v859 = vpop.f32.mrb[0].mxu0
    %v860 = vadd.f32 %v726, %v859
    %v861 = vpop.f32.mrb[0].mxu0
    %862 = vmatprep.mubr.f32.mxu0 0.0
    %863 = vmatmul.mubr.f32.gmra.mrb[0].mxu0 %v687
    %v864 = vpop.f32.mrb[0].mxu0
    %v865 = vadd.f32 %v726, %v864
    %v866 = vpop.f32.mrb[0].mxu0
    %867 = vmatprep.mubr.f32.mxu0 0.0
    %868 = vmatmul.mubr.f32.gmra.mrb[0].mxu0 %v688
    %v869 = vpop.f32.mrb[0].mxu0
    %v870 = vadd.f32 %v726, %v869
    %v871 = vpop.f32.mrb[0].mxu0
    %872 = vmatprep.mubr.f32.mxu0 0.0
    %873 = vmatmul.mubr.f32.gmra.mrb[0].mxu0 %v689
    %v874 = vpop.f32.mrb[0].mxu0
    %v875 = vadd.f32 %v726, %v874
    %v876 = vpop.f32.mrb[0].mxu0
    %877 = vmatprep.mubr.f32.mxu0 0.0
    %878 = vmatmul.mubr.f32.gmra.mrb[0].mxu0 %v690
    %v879 = vpop.f32.mrb[0].mxu0
    %v880 = vadd.f32 %v726, %v879
    %v881 = vpop.f32.mrb[0].mxu0
    %882 = vmatprep.mubr.f32.mxu0 0.0
    %883 = vmatmul.mubr.f32.gmra.mrb[0].mxu0 %v691
    %v884 = vpop.f32.mrb[0].mxu0
    %v885 = vadd.f32 %v726, %v884
    %v886 = vpop.f32.mrb[0].mxu0
    %887 = vmatprep.mubr.f32.mxu0 0.0
    %888 = vmatmul.mubr.f32.gmra.mrb[0].mxu0 %v692
    %v889 = vpop.f32.mrb[0].mxu0
    %v890 = vadd.f32 %v726, %v889
    %v891 = vpop.f32.mrb[0].mxu0
    %892 = vmatprep.mubr.f32.mxu0 0.0
    %893 = vmatmul.mubr.f32.gmra.mrb[0].mxu0 %v693
    %v894 = vpop.f32.mrb[0].mxu0
    %v895 = vadd.f32 %v726, %v894
    %v896 = vpop.f32.mrb[0].mxu0
    %897 = vmatprep.mubr.f32.mxu0 0.0
    %898 = vmatmul.mubr.f32.gmra.mrb[0].mxu0 %v694
    %v899 = vpop.f32.mrb[0].mxu0
    %v900 = vadd.f32 %v726, %v899
    %v901 = vpop.f32.mrb[0].mxu0
    %902 = vmatprep.mubr.f32.mxu0 0.0
    %903 = vmatmul.mubr.f32.gmra.mrb[0].mxu0 %v695
    %v904 = vpop.f32.mrb[0].mxu0
    %v905 = vadd.f32 %v726, %v904
    %v906 = vpop.f32.mrb[0].mxu0
    %907 = vmatprep.mubr.f32.mxu0 0.0
    %908 = vmatmul.mubr.f32.gmra.mrb[0].mxu0 %v696
    %v909 = vpop.f32.mrb[0].mxu0
    %v910 = vadd.f32 %v726, %v909
    %v911 = vpop.f32.mrb[0].mxu0
    %912 = vmatprep.mubr.f32.mxu0 0.0
    %913 = vmatmul.mubr.f32.gmra.mrb[0].mxu0 %v697
    %v914 = vpop.f32.mrb[0].mxu0
    %v915 = vadd.f32 %v726, %v914
    %v916 = vpop.f32.mrb[0].mxu0
    %917 = vmatprep.mubr.f32.mxu0 0.0
    %918 = vmatmul.mubr.f32.gmra.mrb[0].mxu0 %v698
    %v919 = vpop.f32.mrb[0].mxu0
    %v920 = vadd.f32 %v726, %v919
    %v921 = vpop.f32.mrb[0].mxu0
    %922 = vmatprep.mubr.f32.mxu0 0.0
    %923 = vmatmul.mubr.f32.gmra.mrb[0].mxu0 %v699
    %v924 = vpop.f32.mrb[0].mxu0
    %v925 = vadd.f32 %v726, %v924
    %v926 = vpop.f32.mrb[0].mxu0
    %927 = vmatprep.mubr.f32.mxu0 0.0
    %928 = vmatmul.mubr.f32.gmra.mrb[0].mxu0 %v700
    %v929 = vpop.f32.mrb[0].mxu0
    %v930 = vadd.f32 %v726, %v929
    %v931 = vpop.f32.mrb[0].mxu0
    %932 = vmatprep.mubr.f32.mxu0 0.0
    %933 = vmatmul.mubr.f32.gmra.mrb[0].mxu0 %v701
    %v934 = vpop.f32.mrb[0].mxu0
    %v935 = vadd.f32 %v726, %v934
    %v936 = vpop.f32.mrb[0].mxu0
    %937 = vmatprep.mubr.f32.mxu0 0.0
    %938 = vmatmul.mubr.f32.gmra.mrb[0].mxu0 %v702
    %v939 = vpop.f32.mrb[0].mxu0
    %v940 = vadd.f32 %v726, %v939
    %v941 = vpop.f32.mrb[0].mxu0
    %942 = vmatprep.mubr.f32.mxu0 0.0
    %943 = vmatmul.mubr.f32.gmra.mrb[0].mxu0 %v703
    %v944 = vpop.f32.mrb[0].mxu0
    %v945 = vadd.f32 %v726, %v944
    %v946 = vpop.f32.mrb[0].mxu0
    %947 = vmatprep.mubr.f32.mxu0 0.0
    %948 = vmatmul.mubr.f32.gmra.mrb[0].mxu0 %v704
    %v949 = vpop.f32.mrb[0].mxu0
    %v950 = vadd.f32 %v726, %v949
    %v951 = vpop.f32.mrb[0].mxu0
    %952 = vdwg.mxu0
    %985 = vrot.lane.b32.xlu0 %v795, 32
    %v986 = vpop.permute.xlu0 %985
    %987 = vrot.lane.b32.xlu0 %v800, 32
    %v988 = vpop.permute.xlu0 %987
    %989 = vrot.lane.b32.xlu0 %v805, 32
    %v990 = vpop.permute.xlu0 %989
    %991 = vrot.lane.b32.xlu0 %v810, 32
    %v992 = vpop.permute.xlu0 %991
    %993 = vrot.lane.b32.xlu0 %v815, 32
    %v994 = vpop.permute.xlu0 %993
    %995 = vrot.lane.b32.xlu0 %v820, 32
    %v996 = vpop.permute.xlu0 %995
    %997 = vrot.lane.b32.xlu0 %v825, 32
    %v998 = vpop.permute.xlu0 %997
    %999 = vrot.lane.b32.xlu0 %v830, 32
    %v1000 = vpop.permute.xlu0 %999
    %1001 = vrot.lane.b32.xlu0 %v835, 32
    %v1002 = vpop.permute.xlu0 %1001
    %1003 = vrot.lane.b32.xlu0 %v840, 32
    %v1004 = vpop.permute.xlu0 %1003
    %1005 = vrot.lane.b32.xlu0 %v845, 32
    %v1006 = vpop.permute.xlu0 %1005
    %1007 = vrot.lane.b32.xlu0 %v850, 32
    %v1008 = vpop.permute.xlu0 %1007
    %1009 = vrot.lane.b32.xlu0 %v855, 32
    %v1010 = vpop.permute.xlu0 %1009
    %1011 = vrot.lane.b32.xlu0 %v860, 32
    %v1012 = vpop.permute.xlu0 %1011
    %1013 = vrot.lane.b32.xlu0 %v865, 32
    %v1014 = vpop.permute.xlu0 %1013
    %1015 = vrot.lane.b32.xlu0 %v870, 32
    %v1016 = vpop.permute.xlu0 %1015
    %1017 = vrot.lane.b32.xlu0 %v875, 32
    %v1018 = vpop.permute.xlu0 %1017
    %1019 = vrot.lane.b32.xlu0 %v880, 32
    %v1020 = vpop.permute.xlu0 %1019
    %1021 = vrot.lane.b32.xlu0 %v885, 32
    %v1022 = vpop.permute.xlu0 %1021
    %1023 = vrot.lane.b32.xlu0 %v890, 32
    %v1024 = vpop.permute.xlu0 %1023
    %1025 = vrot.lane.b32.xlu0 %v895, 32
    %v1026 = vpop.permute.xlu0 %1025
    %1027 = vrot.lane.b32.xlu0 %v900, 32
    %v1028 = vpop.permute.xlu0 %1027
    %1029 = vrot.lane.b32.xlu0 %v905, 32
    %v1030 = vpop.permute.xlu0 %1029
    %1031 = vrot.lane.b32.xlu0 %v910, 32
    %v1032 = vpop.permute.xlu0 %1031
    %1033 = vrot.lane.b32.xlu0 %v915, 32
    %v1034 = vpop.permute.xlu0 %1033
    %1035 = vrot.lane.b32.xlu0 %v920, 32
    %v1036 = vpop.permute.xlu0 %1035
    %1037 = vrot.lane.b32.xlu0 %v925, 32
    %v1038 = vpop.permute.xlu0 %1037
    %1039 = vrot.lane.b32.xlu0 %v930, 32
    %v1040 = vpop.permute.xlu0 %1039
    %1041 = vrot.lane.b32.xlu0 %v935, 32
    %v1042 = vpop.permute.xlu0 %1041
    %1043 = vrot.lane.b32.xlu0 %v940, 32
    %v1044 = vpop.permute.xlu0 %1043
    %1045 = vrot.lane.b32.xlu0 %v945, 32
    %v1046 = vpop.permute.xlu0 %1045
    %1047 = vrot.lane.b32.xlu0 %v950, 32
    %v1048 = vpop.permute.xlu0 %1047
    %v1081 = vsub.f32 %v27, %v986
    %v1082 = vsub.f32 %v28, %v988
    %v1083 = vsub.f32 %v29, %v990
    %v1084 = vsub.f32 %v30, %v992
    %v1085 = vsub.f32 %v31, %v994
    %v1086 = vsub.f32 %v32, %v996
    %v1087 = vsub.f32 %v33, %v998
    %v1088 = vsub.f32 %v34, %v1000
    %v1089 = vsub.f32 %v35, %v1002
    %v1090 = vsub.f32 %v36, %v1004
    %v1091 = vsub.f32 %v37, %v1006
    %v1092 = vsub.f32 %v38, %v1008
    %v1093 = vsub.f32 %v39, %v1010
    %v1094 = vsub.f32 %v40, %v1012
    %v1095 = vsub.f32 %v41, %v1014
    %v1096 = vsub.f32 %v42, %v1016
    %v1097 = vsub.f32 %v43, %v1018
    %v1098 = vsub.f32 %v44, %v1020
    %v1099 = vsub.f32 %v45, %v1022
    %v1100 = vsub.f32 %v46, %v1024
    %v1101 = vsub.f32 %v47, %v1026
    %v1102 = vsub.f32 %v48, %v1028
    %v1103 = vsub.f32 %v49, %v1030
    %v1104 = vsub.f32 %v50, %v1032
    %v1105 = vsub.f32 %v51, %v1034
    %v1106 = vsub.f32 %v52, %v1036
    %v1107 = vsub.f32 %v53, %v1038
    %v1108 = vsub.f32 %v54, %v1040
    %v1109 = vsub.f32 %v55, %v1042
    %v1110 = vsub.f32 %v56, %v1044
    %v1111 = vsub.f32 %v57, %v1046
    %v1112 = vsub.f32 %v58, %v1048
    %v1113 = vmul.f32 %v1081, %v1081
    %v1114 = vmul.f32 %v1082, %v1082
    %v1115 = vmul.f32 %v1083, %v1083
    %v1116 = vmul.f32 %v1084, %v1084
    %v1117 = vmul.f32 %v1085, %v1085
    %v1118 = vmul.f32 %v1086, %v1086
    %v1119 = vmul.f32 %v1087, %v1087
    %v1120 = vmul.f32 %v1088, %v1088
    %v1121 = vmul.f32 %v1089, %v1089
    %v1122 = vmul.f32 %v1090, %v1090
    %v1123 = vmul.f32 %v1091, %v1091
    %v1124 = vmul.f32 %v1092, %v1092
    %v1125 = vmul.f32 %v1093, %v1093
    %v1126 = vmul.f32 %v1094, %v1094
    %v1127 = vmul.f32 %v1095, %v1095
    %v1128 = vmul.f32 %v1096, %v1096
    %v1129 = vmul.f32 %v1097, %v1097
    %v1130 = vmul.f32 %v1098, %v1098
    %v1131 = vmul.f32 %v1099, %v1099
    %v1132 = vmul.f32 %v1100, %v1100
    %v1133 = vmul.f32 %v1101, %v1101
    %v1134 = vmul.f32 %v1102, %v1102
    %v1135 = vmul.f32 %v1103, %v1103
    %v1136 = vmul.f32 %v1104, %v1104
    %v1137 = vmul.f32 %v1105, %v1105
    %v1138 = vmul.f32 %v1106, %v1106
    %v1139 = vmul.f32 %v1107, %v1107
    %v1140 = vmul.f32 %v1108, %v1108
    %v1141 = vmul.f32 %v1109, %v1109
    %v1142 = vmul.f32 %v1110, %v1110
    %v1143 = vmul.f32 %v1111, %v1111
    %v1144 = vmul.f32 %v1112, %v1112
    %1177 = vrot.lane.b32.xlu0 %v1113, 96
    %v1178 = vpop.permute.xlu0 %1177
    %1179 = vrot.lane.b32.xlu0 %v1114, 96
    %v1180 = vpop.permute.xlu0 %1179
    %1181 = vrot.lane.b32.xlu0 %v1115, 96
    %v1182 = vpop.permute.xlu0 %1181
    %1183 = vrot.lane.b32.xlu0 %v1116, 96
    %v1184 = vpop.permute.xlu0 %1183
    %1185 = vrot.lane.b32.xlu0 %v1117, 96
    %v1186 = vpop.permute.xlu0 %1185
    %1187 = vrot.lane.b32.xlu0 %v1118, 96
    %v1188 = vpop.permute.xlu0 %1187
    %1189 = vrot.lane.b32.xlu0 %v1119, 96
    %v1190 = vpop.permute.xlu0 %1189
    %1191 = vrot.lane.b32.xlu0 %v1120, 96
    %v1192 = vpop.permute.xlu0 %1191
    %1193 = vrot.lane.b32.xlu0 %v1121, 96
    %v1194 = vpop.permute.xlu0 %1193
    %1195 = vrot.lane.b32.xlu0 %v1122, 96
    %v1196 = vpop.permute.xlu0 %1195
    %1197 = vrot.lane.b32.xlu0 %v1123, 96
    %v1198 = vpop.permute.xlu0 %1197
    %1199 = vrot.lane.b32.xlu0 %v1124, 96
    %v1200 = vpop.permute.xlu0 %1199
    %1201 = vrot.lane.b32.xlu0 %v1125, 96
    %v1202 = vpop.permute.xlu0 %1201
    %1203 = vrot.lane.b32.xlu0 %v1126, 96
    %v1204 = vpop.permute.xlu0 %1203
    %1205 = vrot.lane.b32.xlu0 %v1127, 96
    %v1206 = vpop.permute.xlu0 %1205
    %1207 = vrot.lane.b32.xlu0 %v1128, 96
    %v1208 = vpop.permute.xlu0 %1207
    %1209 = vrot.lane.b32.xlu0 %v1129, 96
    %v1210 = vpop.permute.xlu0 %1209
    %1211 = vrot.lane.b32.xlu0 %v1130, 96
    %v1212 = vpop.permute.xlu0 %1211
    %1213 = vrot.lane.b32.xlu0 %v1131, 96
    %v1214 = vpop.permute.xlu0 %1213
    %1215 = vrot.lane.b32.xlu0 %v1132, 96
    %v1216 = vpop.permute.xlu0 %1215
    %1217 = vrot.lane.b32.xlu0 %v1133, 96
    %v1218 = vpop.permute.xlu0 %1217
    %1219 = vrot.lane.b32.xlu0 %v1134, 96
    %v1220 = vpop.permute.xlu0 %1219
    %1221 = vrot.lane.b32.xlu0 %v1135, 96
    %v1222 = vpop.permute.xlu0 %1221
    %1223 = vrot.lane.b32.xlu0 %v1136, 96
    %v1224 = vpop.permute.xlu0 %1223
    %1225 = vrot.lane.b32.xlu0 %v1137, 96
    %v1226 = vpop.permute.xlu0 %1225
    %1227 = vrot.lane.b32.xlu0 %v1138, 96
    %v1228 = vpop.permute.xlu0 %1227
    %1229 = vrot.lane.b32.xlu0 %v1139, 96
    %v1230 = vpop.permute.xlu0 %1229
    %1231 = vrot.lane.b32.xlu0 %v1140, 96
    %v1232 = vpop.permute.xlu0 %1231
    %1233 = vrot.lane.b32.xlu0 %v1141, 96
    %v1234 = vpop.permute.xlu0 %1233
    %1235 = vrot.lane.b32.xlu0 %v1142, 96
    %v1236 = vpop.permute.xlu0 %1235
    %1237 = vrot.lane.b32.xlu0 %v1143, 96
    %v1238 = vpop.permute.xlu0 %1237
    %1239 = vrot.lane.b32.xlu0 %v1144, 96
    %v1240 = vpop.permute.xlu0 %1239
    %vm1273 = vcmask 64512
    %v1274 = vsel %vm1273, %v1178, 0.0
    %1275 = vadd.xlane.f32.xlu0 %v1274
    %v1276 = vpop.xlane.xlu0 %1275
    %v1277 = vsel %vm1273, %v1180, 0.0
    %1278 = vadd.xlane.f32.xlu0 %v1277
    %v1279 = vpop.xlane.xlu0 %1278
    %v1280 = vsel %vm1273, %v1182, 0.0
    %1281 = vadd.xlane.f32.xlu0 %v1280
    %v1282 = vpop.xlane.xlu0 %1281
    %v1283 = vsel %vm1273, %v1184, 0.0
    %1284 = vadd.xlane.f32.xlu0 %v1283
    %v1285 = vpop.xlane.xlu0 %1284
    %v1286 = vsel %vm1273, %v1186, 0.0
    %1287 = vadd.xlane.f32.xlu0 %v1286
    %v1288 = vpop.xlane.xlu0 %1287
    %v1289 = vsel %vm1273, %v1188, 0.0
    %1290 = vadd.xlane.f32.xlu0 %v1289
    %v1291 = vpop.xlane.xlu0 %1290
    %v1292 = vsel %vm1273, %v1190, 0.0
    %1293 = vadd.xlane.f32.xlu0 %v1292
    %v1294 = vpop.xlane.xlu0 %1293
    %v1295 = vsel %vm1273, %v1192, 0.0
    %1296 = vadd.xlane.f32.xlu0 %v1295
    %v1297 = vpop.xlane.xlu0 %1296
    %v1298 = vsel %vm1273, %v1194, 0.0
    %1299 = vadd.xlane.f32.xlu0 %v1298
    %v1300 = vpop.xlane.xlu0 %1299
    %v1301 = vsel %vm1273, %v1196, 0.0
    %1302 = vadd.xlane.f32.xlu0 %v1301
    %v1303 = vpop.xlane.xlu0 %1302
    %v1304 = vsel %vm1273, %v1198, 0.0
    %1305 = vadd.xlane.f32.xlu0 %v1304
    %v1306 = vpop.xlane.xlu0 %1305
    %v1307 = vsel %vm1273, %v1200, 0.0
    %1308 = vadd.xlane.f32.xlu0 %v1307
    %v1309 = vpop.xlane.xlu0 %1308
    %v1310 = vsel %vm1273, %v1202, 0.0
    %1311 = vadd.xlane.f32.xlu0 %v1310
    %v1312 = vpop.xlane.xlu0 %1311
    %v1313 = vsel %vm1273, %v1204, 0.0
    %1314 = vadd.xlane.f32.xlu0 %v1313
    %v1315 = vpop.xlane.xlu0 %1314
    %v1316 = vsel %vm1273, %v1206, 0.0
    %1317 = vadd.xlane.f32.xlu0 %v1316
    %v1318 = vpop.xlane.xlu0 %1317
    %v1319 = vsel %vm1273, %v1208, 0.0
    %1320 = vadd.xlane.f32.xlu0 %v1319
    %v1321 = vpop.xlane.xlu0 %1320
    %v1322 = vsel %vm1273, %v1210, 0.0
    %1323 = vadd.xlane.f32.xlu0 %v1322
    %v1324 = vpop.xlane.xlu0 %1323
    %v1325 = vsel %vm1273, %v1212, 0.0
    %1326 = vadd.xlane.f32.xlu0 %v1325
    %v1327 = vpop.xlane.xlu0 %1326
    %v1328 = vsel %vm1273, %v1214, 0.0
    %1329 = vadd.xlane.f32.xlu0 %v1328
    %v1330 = vpop.xlane.xlu0 %1329
    %v1331 = vsel %vm1273, %v1216, 0.0
    %1332 = vadd.xlane.f32.xlu0 %v1331
    %v1333 = vpop.xlane.xlu0 %1332
    %v1334 = vsel %vm1273, %v1218, 0.0
    %1335 = vadd.xlane.f32.xlu0 %v1334
    %v1336 = vpop.xlane.xlu0 %1335
    %v1337 = vsel %vm1273, %v1220, 0.0
    %1338 = vadd.xlane.f32.xlu0 %v1337
    %v1339 = vpop.xlane.xlu0 %1338
    %v1340 = vsel %vm1273, %v1222, 0.0
    %1341 = vadd.xlane.f32.xlu0 %v1340
    %v1342 = vpop.xlane.xlu0 %1341
    %v1343 = vsel %vm1273, %v1224, 0.0
    %1344 = vadd.xlane.f32.xlu0 %v1343
    %v1345 = vpop.xlane.xlu0 %1344
    %v1346 = vsel %vm1273, %v1226, 0.0
    %1347 = vadd.xlane.f32.xlu0 %v1346
    %v1348 = vpop.xlane.xlu0 %1347
    %v1349 = vsel %vm1273, %v1228, 0.0
    %1350 = vadd.xlane.f32.xlu0 %v1349
    %v1351 = vpop.xlane.xlu0 %1350
    %v1352 = vsel %vm1273, %v1230, 0.0
    %1353 = vadd.xlane.f32.xlu0 %v1352
    %v1354 = vpop.xlane.xlu0 %1353
    %v1355 = vsel %vm1273, %v1232, 0.0
    %1356 = vadd.xlane.f32.xlu0 %v1355
    %v1357 = vpop.xlane.xlu0 %1356
    %v1358 = vsel %vm1273, %v1234, 0.0
    %1359 = vadd.xlane.f32.xlu0 %v1358
    %v1360 = vpop.xlane.xlu0 %1359
    %v1361 = vsel %vm1273, %v1236, 0.0
    %1362 = vadd.xlane.f32.xlu0 %v1361
    %v1363 = vpop.xlane.xlu0 %1362
    %v1364 = vsel %vm1273, %v1238, 0.0
    %1365 = vadd.xlane.f32.xlu0 %v1364
    %v1366 = vpop.xlane.xlu0 %1365
    %v1367 = vsel %vm1273, %v1240, 0.0
    %1368 = vadd.xlane.f32.xlu0 %v1367
    %v1369 = vpop.xlane.xlu0 %1368
    %v1370 = vmul.f32 %v1276, 4.0
    %v1371 = vmul.f32 %v1279, 4.0
    %v1372 = vmul.f32 %v1282, 4.0
    %v1373 = vmul.f32 %v1285, 4.0
    %v1374 = vmul.f32 %v1288, 4.0
    %v1375 = vmul.f32 %v1291, 4.0
    %v1376 = vmul.f32 %v1294, 4.0
    %v1377 = vmul.f32 %v1297, 4.0
    %v1378 = vmul.f32 %v1300, 4.0
    %v1379 = vmul.f32 %v1303, 4.0
    %v1380 = vmul.f32 %v1306, 4.0
    %v1381 = vmul.f32 %v1309, 4.0
    %v1382 = vmul.f32 %v1312, 4.0
    %v1383 = vmul.f32 %v1315, 4.0
    %v1384 = vmul.f32 %v1318, 4.0
    %v1385 = vmul.f32 %v1321, 4.0
    %v1386 = vmul.f32 %v1324, 4.0
    %v1387 = vmul.f32 %v1327, 4.0
    %v1388 = vmul.f32 %v1330, 4.0
    %v1389 = vmul.f32 %v1333, 4.0
    %v1390 = vmul.f32 %v1336, 4.0
    %v1391 = vmul.f32 %v1339, 4.0
    %v1392 = vmul.f32 %v1342, 4.0
    %v1393 = vmul.f32 %v1345, 4.0
    %v1394 = vmul.f32 %v1348, 4.0
    %v1395 = vmul.f32 %v1351, 4.0
    %v1396 = vmul.f32 %v1354, 4.0
    %v1397 = vmul.f32 %v1357, 4.0
    %v1398 = vmul.f32 %v1360, 4.0
    %v1399 = vmul.f32 %v1363, 4.0
    %v1400 = vmul.f32 %v1366, 4.0
    %v1401 = vmul.f32 %v1369, 4.0
    %v1402 = vmul.f32 %v1370, -0.5
    %v1403 = vmul.f32 %v1371, -0.5
    %v1404 = vmul.f32 %v1372, -0.5
    %v1405 = vmul.f32 %v1373, -0.5
    %v1406 = vmul.f32 %v1374, -0.5
    %v1407 = vmul.f32 %v1375, -0.5
    %v1408 = vmul.f32 %v1376, -0.5
    %v1409 = vmul.f32 %v1377, -0.5
    %v1410 = vmul.f32 %v1378, -0.5
    %v1411 = vmul.f32 %v1379, -0.5
    %v1412 = vmul.f32 %v1380, -0.5
    %v1413 = vmul.f32 %v1381, -0.5
    %v1414 = vmul.f32 %v1382, -0.5
    %v1415 = vmul.f32 %v1383, -0.5
    %v1416 = vmul.f32 %v1384, -0.5
    %v1417 = vmul.f32 %v1385, -0.5
    %v1418 = vmul.f32 %v1386, -0.5
    %v1419 = vmul.f32 %v1387, -0.5
    %v1420 = vmul.f32 %v1388, -0.5
    %v1421 = vmul.f32 %v1389, -0.5
    %v1422 = vmul.f32 %v1390, -0.5
    %v1423 = vmul.f32 %v1391, -0.5
    %v1424 = vmul.f32 %v1392, -0.5
    %v1425 = vmul.f32 %v1393, -0.5
    %v1426 = vmul.f32 %v1394, -0.5
    %v1427 = vmul.f32 %v1395, -0.5
    %v1428 = vmul.f32 %v1396, -0.5
    %v1429 = vmul.f32 %v1397, -0.5
    %v1430 = vmul.f32 %v1398, -0.5
    %v1431 = vmul.f32 %v1399, -0.5
    %v1432 = vmul.f32 %v1400, -0.5
    %v1433 = vmul.f32 %v1401, -0.5
    %v1434 = vadd.f32 %v1402, -1.8063308
    %v1435 = vadd.f32 %v1403, -1.8063308
    %v1436 = vadd.f32 %v1404, -1.8063308
    %v1437 = vadd.f32 %v1405, -1.8063308
    %v1438 = vadd.f32 %v1406, -1.8063308
    %v1439 = vadd.f32 %v1407, -1.8063308
    %v1440 = vadd.f32 %v1408, -1.8063308
    %v1441 = vadd.f32 %v1409, -1.8063308
    %v1442 = vadd.f32 %v1410, -1.8063308
    %v1443 = vadd.f32 %v1411, -1.8063308
    %v1444 = vadd.f32 %v1412, -1.8063308
    %v1445 = vadd.f32 %v1413, -1.8063308
    %v1446 = vadd.f32 %v1414, -1.8063308
    %v1447 = vadd.f32 %v1415, -1.8063308
    %v1448 = vadd.f32 %v1416, -1.8063308
    %v1449 = vadd.f32 %v1417, -1.8063308
    %v1450 = vadd.f32 %v1418, -1.8063308
    %v1451 = vadd.f32 %v1419, -1.8063308
    %v1452 = vadd.f32 %v1420, -1.8063308
    %v1453 = vadd.f32 %v1421, -1.8063308
    %v1454 = vadd.f32 %v1422, -1.8063308
    %v1455 = vadd.f32 %v1423, -1.8063308
    %v1456 = vadd.f32 %v1424, -1.8063308
    %v1457 = vadd.f32 %v1425, -1.8063308
    %v1458 = vadd.f32 %v1426, -1.8063308
    %v1459 = vadd.f32 %v1427, -1.8063308
    %v1460 = vadd.f32 %v1428, -1.8063308
    %v1461 = vadd.f32 %v1429, -1.8063308
    %v1462 = vadd.f32 %v1430, -1.8063308
    %v1463 = vadd.f32 %v1431, -1.8063308
    %v1464 = vadd.f32 %v1432, -1.8063308
    %v1465 = vadd.f32 %v1433, -1.8063308
    %1466 = vst [vmem:[#allocation2] sm:$0xff] %v795
    %1467 = vst [vmem:[#allocation2 + $0x8] sm:$0xff] %v800
    %1468 = vst [vmem:[#allocation2 + $0x10] sm:$0xff] %v805
    %1469 = vst [vmem:[#allocation2 + $0x18] sm:$0xff] %v810
    %1470 = vst [vmem:[#allocation2 + $0x20] sm:$0xff] %v815
    %1471 = vst [vmem:[#allocation2 + $0x28] sm:$0xff] %v820
    %1472 = vst [vmem:[#allocation2 + $0x30] sm:$0xff] %v825
    %1473 = vst [vmem:[#allocation2 + $0x38] sm:$0xff] %v830
    %1474 = vst [vmem:[#allocation2 + $0x40] sm:$0xff] %v835
    %1475 = vst [vmem:[#allocation2 + $0x48] sm:$0xff] %v840
    %1476 = vst [vmem:[#allocation2 + $0x50] sm:$0xff] %v845
    %1477 = vst [vmem:[#allocation2 + $0x58] sm:$0xff] %v850
    %1478 = vst [vmem:[#allocation2 + $0x60] sm:$0xff] %v855
    %1479 = vst [vmem:[#allocation2 + $0x68] sm:$0xff] %v860
    %1480 = vst [vmem:[#allocation2 + $0x70] sm:$0xff] %v865
    %1481 = vst [vmem:[#allocation2 + $0x78] sm:$0xff] %v870
    %1482 = vst [vmem:[#allocation2 + $0x80] sm:$0xff] %v875
    %1483 = vst [vmem:[#allocation2 + $0x88] sm:$0xff] %v880
    %1484 = vst [vmem:[#allocation2 + $0x90] sm:$0xff] %v885
    %1485 = vst [vmem:[#allocation2 + $0x98] sm:$0xff] %v890
    %1486 = vst [vmem:[#allocation2 + $0xa0] sm:$0xff] %v895
    %1487 = vst [vmem:[#allocation2 + $0xa8] sm:$0xff] %v900
    %1488 = vst [vmem:[#allocation2 + $0xb0] sm:$0xff] %v905
    %1489 = vst [vmem:[#allocation2 + $0xb8] sm:$0xff] %v910
    %1490 = vst [vmem:[#allocation2 + $0xc0] sm:$0xff] %v915
    %1491 = vst [vmem:[#allocation2 + $0xc8] sm:$0xff] %v920
    %1492 = vst [vmem:[#allocation2 + $0xd0] sm:$0xff] %v925
    %1493 = vst [vmem:[#allocation2 + $0xd8] sm:$0xff] %v930
    %1494 = vst [vmem:[#allocation2 + $0xe0] sm:$0xff] %v935
    %1495 = vst [vmem:[#allocation2 + $0xe8] sm:$0xff] %v940
    %1496 = vst [vmem:[#allocation2 + $0xf0] sm:$0xff] %v945
    %1497 = vst [vmem:[#allocation2 + $0xf8] sm:$0xff] %v950
    %vm1498 = vcmask 80968
    %1499 = vst.msk [vmem:[#allocation2] sm:$0xff] %vm1498, %v1434
    %1500 = vst.msk [vmem:[#allocation2 + $0x8] sm:$0xff] %vm1498, %v1435
    %1501 = vst.msk [vmem:[#allocation2 + $0x10] sm:$0xff] %vm1498, %v1436
    %1502 = vst.msk [vmem:[#allocation2 + $0x18] sm:$0xff] %vm1498, %v1437
    %1503 = vst.msk [vmem:[#allocation2 + $0x20] sm:$0xff] %vm1498, %v1438
    %1504 = vst.msk [vmem:[#allocation2 + $0x28] sm:$0xff] %vm1498, %v1439
    %1505 = vst.msk [vmem:[#allocation2 + $0x30] sm:$0xff] %vm1498, %v1440
    %1506 = vst.msk [vmem:[#allocation2 + $0x38] sm:$0xff] %vm1498, %v1441
    %1507 = vst.msk [vmem:[#allocation2 + $0x40] sm:$0xff] %vm1498, %v1442
    %1508 = vst.msk [vmem:[#allocation2 + $0x48] sm:$0xff] %vm1498, %v1443
    %1509 = vst.msk [vmem:[#allocation2 + $0x50] sm:$0xff] %vm1498, %v1444
    %1510 = vst.msk [vmem:[#allocation2 + $0x58] sm:$0xff] %vm1498, %v1445
    %1511 = vst.msk [vmem:[#allocation2 + $0x60] sm:$0xff] %vm1498, %v1446
    %1512 = vst.msk [vmem:[#allocation2 + $0x68] sm:$0xff] %vm1498, %v1447
    %1513 = vst.msk [vmem:[#allocation2 + $0x70] sm:$0xff] %vm1498, %v1448
    %1514 = vst.msk [vmem:[#allocation2 + $0x78] sm:$0xff] %vm1498, %v1449
    %1515 = vst.msk [vmem:[#allocation2 + $0x80] sm:$0xff] %vm1498, %v1450
    %1516 = vst.msk [vmem:[#allocation2 + $0x88] sm:$0xff] %vm1498, %v1451
    %1517 = vst.msk [vmem:[#allocation2 + $0x90] sm:$0xff] %vm1498, %v1452
    %1518 = vst.msk [vmem:[#allocation2 + $0x98] sm:$0xff] %vm1498, %v1453
    %1519 = vst.msk [vmem:[#allocation2 + $0xa0] sm:$0xff] %vm1498, %v1454
    %1520 = vst.msk [vmem:[#allocation2 + $0xa8] sm:$0xff] %vm1498, %v1455
    %1521 = vst.msk [vmem:[#allocation2 + $0xb0] sm:$0xff] %vm1498, %v1456
    %1522 = vst.msk [vmem:[#allocation2 + $0xb8] sm:$0xff] %vm1498, %v1457
    %1523 = vst.msk [vmem:[#allocation2 + $0xc0] sm:$0xff] %vm1498, %v1458
    %1524 = vst.msk [vmem:[#allocation2 + $0xc8] sm:$0xff] %vm1498, %v1459
    %1525 = vst.msk [vmem:[#allocation2 + $0xd0] sm:$0xff] %vm1498, %v1460
    %1526 = vst.msk [vmem:[#allocation2 + $0xd8] sm:$0xff] %vm1498, %v1461
    %1527 = vst.msk [vmem:[#allocation2 + $0xe0] sm:$0xff] %vm1498, %v1462
    %1528 = vst.msk [vmem:[#allocation2 + $0xe8] sm:$0xff] %vm1498, %v1463
    %1529 = vst.msk [vmem:[#allocation2 + $0xf0] sm:$0xff] %vm1498, %v1464
    %1530 = vst.msk [vmem:[#allocation2 + $0xf8] sm:$0xff] %vm1498, %v1465
    // Predicated region
    $region30: #{tpu_custom_call.1} parent=1 // pred_check
      _
    $region31: #{tpu_custom_call.1} parent=1 // pred_check_branch
      %1532 = sbr.rel (0) target = $region33
    $region32: #{tpu_custom_call.1} parent=1 // pred_region
      %s1534 = ssub.s32 4096, 4096
      %1535 = vsyncadd [#allocation3], %s1534
      %s1536 = sshll.u32 [#allocation2], 4
      %s1537 = int_to_ptr.vmem [resolvable:$true] %s1536
      %1542 = dma.vmem_to_hbm [thread:$0]  %s1537, 4096, %s7, [#allocation3], 128, 128, 8
    $region33: #{tpu_custom_call.1} parent=1 // pred_fallthru
      _
    // Predicated region
    $region34: #{tpu_custom_call.1} parent=1 // pred_check
      _
    $region35: #{tpu_custom_call.1} parent=1 // pred_check_branch
      %1544 = sbr.rel (0) target = $region37
    $region36: #{tpu_custom_call.1} parent=1 // pred_region
      %1545 = dma.done [#allocation3], 4096
    $region37: #{tpu_custom_call.1} parent=1 // pred_fallthru
      _
    %1546 = vsyncpa [#allocation3], 1

</llo_original>
